<compile_context>
chip_gen: v7x
topology: tpu7x:2x2x1
jax: 0.10.0
libtpu: 0.0.40
codegen_flags: <defaults>
</compile_context>

<pallas_src>
import jax
import jax.numpy as jnp
from jax import lax
from jax.experimental import pallas as pl
from jax.experimental.pallas import tpu as pltpu


def _dwconv_kernel(x_ref, w_ref, b_ref, o_ref):
    # x_ref: (TB, H, W, TC)  activations, channels on the lane axis
    # w_ref: (3, 3, TC)      depthwise filter taps
    # b_ref: (1, TC)         bias
    # o_ref: (TB, H, W, TC)
    TB, H, W, TC = o_ref.shape
    f32 = jnp.float32

    x = x_ref[...]

    # Single halo pad (one copy, not three): zero row above/below, zero column
    # left/right.  Row/col r of xp holds input row/col r - 1.
    zrow = jnp.zeros((TB, 1, W, TC), x.dtype)
    xh = jnp.concatenate([zrow, x, zrow], axis=1)            # (TB, H+2, W, TC)
    zcol = jnp.zeros((TB, H + 2, 1, TC), x.dtype)
    xp = jnp.concatenate([zcol, xh, zcol], axis=2)           # (TB, H+2, W+2, TC)

    w = w_ref[...].astype(f32)            # (3, 3, TC)
    b = b_ref[...].astype(f32)            # (1, TC) -> broadcasts over lanes

    # Seed the accumulator with bias + centre tap.  Every other tap is a
    # static slice of the padded tensor -> no masks, no selects, no rolls;
    # the sublane-offset slices ride the load/shift path, not the VALU.
    acc = xp[:, 1:1 + H, 1:1 + W, :].astype(f32) * w[1, 1] + b
    for dh in range(3):
        for dw in range(3):
            if dh == 1 and dw == 1:
                continue
            acc = acc + xp[:, dh:dh + H, dw:dw + W, :].astype(f32) * w[dh, dw]

    o_ref[...] = acc.astype(o_ref.dtype)


def dwconv_pallas(x, weight, bias, H, W, *, channel_tile=128,
                  batch_fuse_bytes=2 * 1024 * 1024):
    """x: (B, N, C) with N == H*W.  weight: (3, 3, C)  (torch (C,1,3,3) ->
    weight[:, 0].transpose(1, 2, 0)).  bias: (C,).  Returns (B, N, C)."""
    B, N, C = x.shape
    assert N == H * W

    x_img = x.reshape(B, H, W, C)          # pure view, no HBM traffic
    bias2d = bias.reshape(1, C)

    # Channel tile: lane-dense 128-wide tiles when C is large, else the full C
    # (full-extent last dims are always legal block dims; ragged last tile for
    # C not a multiple of 128 is masked by Pallas -- depthwise never mixes lanes).
    TC = C if C <= channel_tile else channel_tile
    n_ct = pl.cdiv(C, TC)

    # Batch fusion for small images: put TB images in one block so a grid step
    # moves a useful amount of data (per-step pipeline overhead ~0.35 us).
    per_image = H * W * TC * x.dtype.itemsize
    TB = 1
    for d in range(1, B + 1):
        if B % d == 0 and d * per_image <= batch_fuse_bytes:
            TB = d
    n_bt = B // TB

    # VMEM budget: double-buffered in/out blocks + the in-kernel padded copy +
    # f32 accumulator headroom, capped generation-aware (v7x: 64 MiB per TC).
    in_blk = TB * H * W * TC * x.dtype.itemsize
    pad_blk = TB * (H + 2) * (W + 2) * TC * x.dtype.itemsize
    acc_blk = TB * H * W * TC * 4
    need = 4 * in_blk + pad_blk + 3 * acc_blk + (1 << 20)
    try:
        cap = int(0.65 * pltpu.get_tpu_info().vmem_capacity_bytes)
    except Exception:
        cap = 40 * 1024 * 1024             # conservative: ~0.65 * v7x's 64 MiB
    vmem_limit = int(min(max(need, 16 * 1024 * 1024), cap))

    out = pl.pallas_call(
        _dwconv_kernel,
        out_shape=jax.ShapeDtypeStruct((B, H, W, C), x.dtype),
        grid_spec=pltpu.PrefetchScalarGridSpec(
            num_scalar_prefetch=0,
            # Channel-tile axis outermost: weight/bias blocks are re-DMA'd only
            # when the channel tile changes, not on every batch step.
            grid=(n_ct, n_bt),
            in_specs=[
                pl.BlockSpec((TB, H, W, TC), lambda c, b: (b, 0, 0, c)),
                pl.BlockSpec((3, 3, TC), lambda c, b: (0, 0, c)),
                pl.BlockSpec((1, TC), lambda c, b: (0, c)),
            ],
            out_specs=pl.BlockSpec((TB, H, W, TC), lambda c, b: (b, 0, 0, c)),
        ),
        compiler_params=pltpu.CompilerParams(
            dimension_semantics=("parallel", "parallel"),
            vmem_limit_bytes=vmem_limit,
        ),
    )(x_img, weight, bias2d)

    return out.reshape(B, N, C)


def dwconv_reference(x, weight, bias, H, W):
    """Pure-JAX reference (mirrors torch NCHW depthwise conv, groups=C)."""
    B, N, C = x.shape
    x_nchw = jnp.transpose(x, (0, 2, 1)).reshape(B, C, H, W)
    w_oihw = jnp.transpose(weight, (2, 0, 1))[:, None, :, :]
    y = lax.conv_general_dilated(
        x_nchw, w_oihw,
        window_strides=(1, 1), padding=((1, 1), (1, 1)),
        dimension_numbers=("NCHW", "OIHW", "NCHW"),
        feature_group_count=C,
        precision=lax.Precision.HIGHEST)
    y = y + bias[None, :, None, None]
    return jnp.transpose(y.reshape(B, C, N), (0, 2, 1))


if __name__ == "__main__":
    key = jax.random.PRNGKey(0)

    def run_case(case_key, B, C, H, W):
        k_x, k_w, k_b = jax.random.split(case_key, 3)
        N = H * W
        x = jax.random.normal(k_x, (B, N, C), dtype=jnp.float32)
        weight = jax.random.normal(k_w, (3, 3, C), dtype=jnp.float32) * 0.1
        bias = jax.random.normal(k_b, (C,), dtype=jnp.float32) * 0.1

        out = jax.block_until_ready(dwconv_pallas(x, weight, bias, H, W))
        ref = dwconv_reference(x, weight, bias, H, W)
        assert out.shape == (B, N, C)
        err = float(jnp.max(jnp.abs(out - ref)))
        assert jnp.allclose(out, ref, atol=1e-4, rtol=1e-4), err

    k1, k2, k3 = jax.random.split(key, 3)
    run_case(k1, B=2, C=8, H=16, W=16)    # small image: batch fused into one block
    run_case(k2, B=1, C=256, H=8, W=8)    # two lane-dense 128-channel tiles
    run_case(k3, B=2, C=48, H=12, W=20)   # non-power-of-2 spatial dims

    print("KERNEL_OK")
</pallas_src>

<mosaic_0001>
module attributes {stable_mosaic.version = 11 : i64} {
  func.func @_dwconv_kernel(%arg0: i32, %arg1: i32, %arg2: memref<2x16x16x8xf32, #tpu.memory_space<vmem>>, %arg3: memref<3x3x8xf32, #tpu.memory_space<vmem>>, %arg4: memref<1x8xf32, #tpu.memory_space<vmem>>, %arg5: memref<2x16x16x8xf32, #tpu.memory_space<vmem>>) attributes {dimension_semantics = [#tpu.dimension_semantics<parallel>, #tpu.dimension_semantics<parallel>], iteration_bounds = array<i64: 1, 1>, scalar_prefetch = 0 : i64, scratch_operands = 0 : i64, tpu.core_type = #tpu.core_type<tc>, window_params = [{transform_indices = @transform_0, window_bounds = array<i64: 2, 16, 16, 8>}, {transform_indices = @transform_1, window_bounds = array<i64: 3, 3, 8>}, {transform_indices = @transform_2, window_bounds = array<i64: 1, 8>}, {transform_indices = @transform_3, window_bounds = array<i64: 2, 16, 16, 8>}]} {
    %c0 = arith.constant 0 : index
    %c0_0 = arith.constant 0 : index
    %c0_1 = arith.constant 0 : index
    %c0_2 = arith.constant 0 : index
    %0 = vector.load %arg2[%c0, %c0_0, %c0_1, %c0_2] : memref<2x16x16x8xf32, #tpu.memory_space<vmem>>, vector<2x16x16x8xf32>
    %cst = arith.constant 0.000000e+00 : f32
    %1 = vector.broadcast %cst : f32 to vector<2x1x16x8xf32>
    %2 = tpu.concatenate %1, %0, %1 in 1 : vector<2x1x16x8xf32>, vector<2x16x16x8xf32>, vector<2x1x16x8xf32> -> vector<2x18x16x8xf32>
    %cst_3 = arith.constant 0.000000e+00 : f32
    %3 = vector.broadcast %cst_3 : f32 to vector<2x18x1x8xf32>
    %4 = tpu.concatenate %3, %2, %3 in 2 : vector<2x18x1x8xf32>, vector<2x18x16x8xf32>, vector<2x18x1x8xf32> -> vector<2x18x18x8xf32>
    %c0_4 = arith.constant 0 : index
    %c0_5 = arith.constant 0 : index
    %c0_6 = arith.constant 0 : index
    %5 = vector.load %arg3[%c0_4, %c0_5, %c0_6] : memref<3x3x8xf32, #tpu.memory_space<vmem>>, vector<3x3x8xf32>
    %c0_7 = arith.constant 0 : index
    %c0_8 = arith.constant 0 : index
    %6 = vector.load %arg4[%c0_7, %c0_8] : memref<1x8xf32, #tpu.memory_space<vmem>>, vector<1x8xf32>
    %7 = vector.extract_strided_slice %4 {offsets = [0, 1, 1, 0], sizes = [2, 16, 16, 8], strides = [1, 1, 1, 1]} : vector<2x18x18x8xf32> to vector<2x16x16x8xf32>
    %8 = vector.extract_strided_slice %5 {offsets = [1, 1, 0], sizes = [1, 1, 8], strides = [1, 1, 1]} : vector<3x3x8xf32> to vector<1x1x8xf32>
    %9 = vector.shape_cast %8 : vector<1x1x8xf32> to vector<8xf32>
    %10 = vector.shape_cast %9 : vector<8xf32> to vector<1x1x1x8xf32>
    %11 = vector.broadcast %10 : vector<1x1x1x8xf32> to vector<2x16x16x8xf32>
    %12 = arith.mulf %7, %11 : vector<2x16x16x8xf32>
    %13 = vector.shape_cast %6 : vector<1x8xf32> to vector<1x1x1x8xf32>
    %14 = vector.broadcast %13 : vector<1x1x1x8xf32> to vector<2x16x16x8xf32>
    %15 = arith.addf %12, %14 : vector<2x16x16x8xf32>
    %16 = vector.extract_strided_slice %4 {offsets = [0, 0, 0, 0], sizes = [2, 16, 16, 8], strides = [1, 1, 1, 1]} : vector<2x18x18x8xf32> to vector<2x16x16x8xf32>
    %17 = vector.extract_strided_slice %5 {offsets = [0, 0, 0], sizes = [1, 1, 8], strides = [1, 1, 1]} : vector<3x3x8xf32> to vector<1x1x8xf32>
    %18 = vector.shape_cast %17 : vector<1x1x8xf32> to vector<8xf32>
    %19 = vector.shape_cast %18 : vector<8xf32> to vector<1x1x1x8xf32>
    %20 = vector.broadcast %19 : vector<1x1x1x8xf32> to vector<2x16x16x8xf32>
    %21 = arith.mulf %16, %20 : vector<2x16x16x8xf32>
    %22 = arith.addf %15, %21 : vector<2x16x16x8xf32>
    %23 = vector.extract_strided_slice %4 {offsets = [0, 0, 1, 0], sizes = [2, 16, 16, 8], strides = [1, 1, 1, 1]} : vector<2x18x18x8xf32> to vector<2x16x16x8xf32>
    %24 = vector.extract_strided_slice %5 {offsets = [0, 1, 0], sizes = [1, 1, 8], strides = [1, 1, 1]} : vector<3x3x8xf32> to vector<1x1x8xf32>
    %25 = vector.shape_cast %24 : vector<1x1x8xf32> to vector<8xf32>
    %26 = vector.shape_cast %25 : vector<8xf32> to vector<1x1x1x8xf32>
    %27 = vector.broadcast %26 : vector<1x1x1x8xf32> to vector<2x16x16x8xf32>
    %28 = arith.mulf %23, %27 : vector<2x16x16x8xf32>
    %29 = arith.addf %22, %28 : vector<2x16x16x8xf32>
    %30 = vector.extract_strided_slice %4 {offsets = [0, 0, 2, 0], sizes = [2, 16, 16, 8], strides = [1, 1, 1, 1]} : vector<2x18x18x8xf32> to vector<2x16x16x8xf32>
    %31 = vector.extract_strided_slice %5 {offsets = [0, 2, 0], sizes = [1, 1, 8], strides = [1, 1, 1]} : vector<3x3x8xf32> to vector<1x1x8xf32>
    %32 = vector.shape_cast %31 : vector<1x1x8xf32> to vector<8xf32>
    %33 = vector.shape_cast %32 : vector<8xf32> to vector<1x1x1x8xf32>
    %34 = vector.broadcast %33 : vector<1x1x1x8xf32> to vector<2x16x16x8xf32>
    %35 = arith.mulf %30, %34 : vector<2x16x16x8xf32>
    %36 = arith.addf %29, %35 : vector<2x16x16x8xf32>
    %37 = vector.extract_strided_slice %4 {offsets = [0, 1, 0, 0], sizes = [2, 16, 16, 8], strides = [1, 1, 1, 1]} : vector<2x18x18x8xf32> to vector<2x16x16x8xf32>
    %38 = vector.extract_strided_slice %5 {offsets = [1, 0, 0], sizes = [1, 1, 8], strides = [1, 1, 1]} : vector<3x3x8xf32> to vector<1x1x8xf32>
    %39 = vector.shape_cast %38 : vector<1x1x8xf32> to vector<8xf32>
    %40 = vector.shape_cast %39 : vector<8xf32> to vector<1x1x1x8xf32>
    %41 = vector.broadcast %40 : vector<1x1x1x8xf32> to vector<2x16x16x8xf32>
    %42 = arith.mulf %37, %41 : vector<2x16x16x8xf32>
    %43 = arith.addf %36, %42 : vector<2x16x16x8xf32>
    %44 = vector.extract_strided_slice %4 {offsets = [0, 1, 2, 0], sizes = [2, 16, 16, 8], strides = [1, 1, 1, 1]} : vector<2x18x18x8xf32> to vector<2x16x16x8xf32>
    %45 = vector.extract_strided_slice %5 {offsets = [1, 2, 0], sizes = [1, 1, 8], strides = [1, 1, 1]} : vector<3x3x8xf32> to vector<1x1x8xf32>
    %46 = vector.shape_cast %45 : vector<1x1x8xf32> to vector<8xf32>
    %47 = vector.shape_cast %46 : vector<8xf32> to vector<1x1x1x8xf32>
    %48 = vector.broadcast %47 : vector<1x1x1x8xf32> to vector<2x16x16x8xf32>
    %49 = arith.mulf %44, %48 : vector<2x16x16x8xf32>
    %50 = arith.addf %43, %49 : vector<2x16x16x8xf32>
    %51 = vector.extract_strided_slice %4 {offsets = [0, 2, 0, 0], sizes = [2, 16, 16, 8], strides = [1, 1, 1, 1]} : vector<2x18x18x8xf32> to vector<2x16x16x8xf32>
    %52 = vector.extract_strided_slice %5 {offsets = [2, 0, 0], sizes = [1, 1, 8], strides = [1, 1, 1]} : vector<3x3x8xf32> to vector<1x1x8xf32>
    %53 = vector.shape_cast %52 : vector<1x1x8xf32> to vector<8xf32>
    %54 = vector.shape_cast %53 : vector<8xf32> to vector<1x1x1x8xf32>
    %55 = vector.broadcast %54 : vector<1x1x1x8xf32> to vector<2x16x16x8xf32>
    %56 = arith.mulf %51, %55 : vector<2x16x16x8xf32>
    %57 = arith.addf %50, %56 : vector<2x16x16x8xf32>
    %58 = vector.extract_strided_slice %4 {offsets = [0, 2, 1, 0], sizes = [2, 16, 16, 8], strides = [1, 1, 1, 1]} : vector<2x18x18x8xf32> to vector<2x16x16x8xf32>
    %59 = vector.extract_strided_slice %5 {offsets = [2, 1, 0], sizes = [1, 1, 8], strides = [1, 1, 1]} : vector<3x3x8xf32> to vector<1x1x8xf32>
    %60 = vector.shape_cast %59 : vector<1x1x8xf32> to vector<8xf32>
    %61 = vector.shape_cast %60 : vector<8xf32> to vector<1x1x1x8xf32>
    %62 = vector.broadcast %61 : vector<1x1x1x8xf32> to vector<2x16x16x8xf32>
    %63 = arith.mulf %58, %62 : vector<2x16x16x8xf32>
    %64 = arith.addf %57, %63 : vector<2x16x16x8xf32>
    %65 = vector.extract_strided_slice %4 {offsets = [0, 2, 2, 0], sizes = [2, 16, 16, 8], strides = [1, 1, 1, 1]} : vector<2x18x18x8xf32> to vector<2x16x16x8xf32>
    %66 = vector.extract_strided_slice %5 {offsets = [2, 2, 0], sizes = [1, 1, 8], strides = [1, 1, 1]} : vector<3x3x8xf32> to vector<1x1x8xf32>
    %67 = vector.shape_cast %66 : vector<1x1x8xf32> to vector<8xf32>
    %68 = vector.shape_cast %67 : vector<8xf32> to vector<1x1x1x8xf32>
    %69 = vector.broadcast %68 : vector<1x1x1x8xf32> to vector<2x16x16x8xf32>
    %70 = arith.mulf %65, %69 : vector<2x16x16x8xf32>
    %71 = arith.addf %64, %70 : vector<2x16x16x8xf32>
    %c0_9 = arith.constant 0 : index
    %c0_10 = arith.constant 0 : index
    %c0_11 = arith.constant 0 : index
    %c0_12 = arith.constant 0 : index
    %72 = vector.load %arg5[%c0_9, %c0_10, %c0_11, %c0_12] : memref<2x16x16x8xf32, #tpu.memory_space<vmem>>, vector<2x16x16x8xf32>
    tpu.vector_store %arg5[%c0_9, %c0_10, %c0_11, %c0_12], %71 {strides = array<i32>} : memref<2x16x16x8xf32, #tpu.memory_space<vmem>>, vector<2x16x16x8xf32>,
    return
  }
  func.func @transform_0(%arg0: i32, %arg1: i32) -> (i32, i32, i32, i32) {
    %c0_i32 = arith.constant 0 : i32
    %c0_i32_0 = arith.constant 0 : i32
    %c0_i32_1 = arith.constant 0 : i32
    return %arg1, %c0_i32, %c0_i32_0, %arg0 : i32, i32, i32, i32
  }
  func.func @transform_1(%arg0: i32, %arg1: i32) -> (i32, i32, i32) {
    %c0_i32 = arith.constant 0 : i32
    %c0_i32_0 = arith.constant 0 : i32
    %c0_i32_1 = arith.constant 0 : i32
    return %c0_i32, %c0_i32_0, %arg0 : i32, i32, i32
  }
  func.func @transform_2(%arg0: i32, %arg1: i32) -> (i32, i32) {
    %c0_i32 = arith.constant 0 : i32
    %c0_i32_0 = arith.constant 0 : i32
    return %c0_i32, %arg0 : i32, i32
  }
  func.func @transform_3(%arg0: i32, %arg1: i32) -> (i32, i32, i32, i32) {
    %c0_i32 = arith.constant 0 : i32
    %c0_i32_0 = arith.constant 0 : i32
    %c0_i32_1 = arith.constant 0 : i32
    return %arg1, %c0_i32, %c0_i32_0, %arg0 : i32, i32, i32, i32
  }
}

</mosaic_0001>

<llo_original>
// kernel: tpu_custom_call.1
$region0: #{tpu_custom_call.1}
  #allocation0 [shape = 'u32[]', space=smem, size = 0x4, offset = 0x4, fixed_abs, tag = 'smem constant byte address 0x4 - core index']
  #allocation1 [shape = 'u32[144,128]{1,0:T(1,128)}', space=vmem, size = 0x12000, scoped, tag = 'internal scratch']
  %s0 = inlined_call_operand.vmem [shape: f32[2,16,16,8], index: 0, kind: input, shape index: {}]
  %s1 = inlined_call_operand.vmem [shape: f32[3,3,8], index: 1, kind: input, shape index: {}]
  %s2 = inlined_call_operand.vmem [shape: f32[1,8], index: 2, kind: input, shape index: {}]
  %s3 = inlined_call_operand.vmem [shape: f32[2,16,16,8], index: 3, kind: output, shape index: {}]
  %s4 = sld [smem:[#allocation0]]
  $region22: #{tpu_custom_call.1} parent=0
    _
  %s6 = ssub.s32 1, %s4
  %s7 = scalar_select 0, %s6, %s4
  // Predicated region
  $region2: #{tpu_custom_call.1} parent=0 // pred_check
    _
  $region3: #{tpu_custom_call.1} parent=0 // pred_check_branch
    %9 = sbr.rel (0) target = $region5
  $region4: #{tpu_custom_call.1} parent=0 // pred_region
    _
  $region5: #{tpu_custom_call.1} parent=0 // pred_fallthru
    _
  // Predicated region
  $region6: #{tpu_custom_call.1} parent=0 // pred_check
    _
  $region7: #{tpu_custom_call.1} parent=0 // pred_check_branch
    %11 = sbr.rel (0) target = $region9
  $region8: #{tpu_custom_call.1} parent=0 // pred_region
    _
  $region9: #{tpu_custom_call.1} parent=0 // pred_fallthru
    _
  // Predicated region
  $region10: #{tpu_custom_call.1} parent=0 // pred_check
    _
  $region11: #{tpu_custom_call.1} parent=0 // pred_check_branch
    %13 = sbr.rel (0) target = $region13
  $region12: #{tpu_custom_call.1} parent=0 // pred_region
    _
  $region13: #{tpu_custom_call.1} parent=0 // pred_fallthru
    _
  %v14 = vld [vmem:[%s0] sm:$0xff]
  %v15 = vld [vmem:[%s0 + $0x8] sm:$0xff]
  %v16 = vld [vmem:[%s0 + $0x10] sm:$0xff]
  %v17 = vld [vmem:[%s0 + $0x18] sm:$0xff]
  %v18 = vld [vmem:[%s0 + $0x20] sm:$0xff]
  %v19 = vld [vmem:[%s0 + $0x28] sm:$0xff]
  %v20 = vld [vmem:[%s0 + $0x30] sm:$0xff]
  %v21 = vld [vmem:[%s0 + $0x38] sm:$0xff]
  %v22 = vld [vmem:[%s0 + $0x40] sm:$0xff]
  %v23 = vld [vmem:[%s0 + $0x48] sm:$0xff]
  %v24 = vld [vmem:[%s0 + $0x50] sm:$0xff]
  %v25 = vld [vmem:[%s0 + $0x58] sm:$0xff]
  %v26 = vld [vmem:[%s0 + $0x60] sm:$0xff]
  %v27 = vld [vmem:[%s0 + $0x68] sm:$0xff]
  %v28 = vld [vmem:[%s0 + $0x70] sm:$0xff]
  %v29 = vld [vmem:[%s0 + $0x78] sm:$0xff]
  %v30 = vld [vmem:[%s0 + $0x80] sm:$0xff]
  %v31 = vld [vmem:[%s0 + $0x88] sm:$0xff]
  %v32 = vld [vmem:[%s0 + $0x90] sm:$0xff]
  %v33 = vld [vmem:[%s0 + $0x98] sm:$0xff]
  %v34 = vld [vmem:[%s0 + $0xa0] sm:$0xff]
  %v35 = vld [vmem:[%s0 + $0xa8] sm:$0xff]
  %v36 = vld [vmem:[%s0 + $0xb0] sm:$0xff]
  %v37 = vld [vmem:[%s0 + $0xb8] sm:$0xff]
  %v38 = vld [vmem:[%s0 + $0xc0] sm:$0xff]
  %v39 = vld [vmem:[%s0 + $0xc8] sm:$0xff]
  %v40 = vld [vmem:[%s0 + $0xd0] sm:$0xff]
  %v41 = vld [vmem:[%s0 + $0xd8] sm:$0xff]
  %v42 = vld [vmem:[%s0 + $0xe0] sm:$0xff]
  %v43 = vld [vmem:[%s0 + $0xe8] sm:$0xff]
  %v44 = vld [vmem:[%s0 + $0xf0] sm:$0xff]
  %v45 = vld [vmem:[%s0 + $0xf8] sm:$0xff]
  %v46 = vld [vmem:[%s0 + $0x100] sm:$0xff]
  %v47 = vld [vmem:[%s0 + $0x108] sm:$0xff]
  %v48 = vld [vmem:[%s0 + $0x110] sm:$0xff]
  %v49 = vld [vmem:[%s0 + $0x118] sm:$0xff]
  %v50 = vld [vmem:[%s0 + $0x120] sm:$0xff]
  %v51 = vld [vmem:[%s0 + $0x128] sm:$0xff]
  %v52 = vld [vmem:[%s0 + $0x130] sm:$0xff]
  %v53 = vld [vmem:[%s0 + $0x138] sm:$0xff]
  %v54 = vld [vmem:[%s0 + $0x140] sm:$0xff]
  %v55 = vld [vmem:[%s0 + $0x148] sm:$0xff]
  %v56 = vld [vmem:[%s0 + $0x150] sm:$0xff]
  %v57 = vld [vmem:[%s0 + $0x158] sm:$0xff]
  %v58 = vld [vmem:[%s0 + $0x160] sm:$0xff]
  %v59 = vld [vmem:[%s0 + $0x168] sm:$0xff]
  %v60 = vld [vmem:[%s0 + $0x170] sm:$0xff]
  %v61 = vld [vmem:[%s0 + $0x178] sm:$0xff]
  %v62 = vld [vmem:[%s0 + $0x180] sm:$0xff]
  %v63 = vld [vmem:[%s0 + $0x188] sm:$0xff]
  %v64 = vld [vmem:[%s0 + $0x190] sm:$0xff]
  %v65 = vld [vmem:[%s0 + $0x198] sm:$0xff]
  %v66 = vld [vmem:[%s0 + $0x1a0] sm:$0xff]
  %v67 = vld [vmem:[%s0 + $0x1a8] sm:$0xff]
  %v68 = vld [vmem:[%s0 + $0x1b0] sm:$0xff]
  %v69 = vld [vmem:[%s0 + $0x1b8] sm:$0xff]
  %v70 = vld [vmem:[%s0 + $0x1c0] sm:$0xff]
  %v71 = vld [vmem:[%s0 + $0x1c8] sm:$0xff]
  %v72 = vld [vmem:[%s0 + $0x1d0] sm:$0xff]
  %v73 = vld [vmem:[%s0 + $0x1d8] sm:$0xff]
  %v74 = vld [vmem:[%s0 + $0x1e0] sm:$0xff]
  %v75 = vld [vmem:[%s0 + $0x1e8] sm:$0xff]
  %v76 = vld [vmem:[%s0 + $0x1f0] sm:$0xff]
  %v77 = vld [vmem:[%s0 + $0x1f8] sm:$0xff]
  %vm143 = vcmask 1040384
  %v144 = vrot.slane 0.0, 7
  %v145 = vsel %vm143, %v144, %v144
  %v146 = vrot.slane %v14, 7
  %v147 = vrot.slane %v15, 7
  %v148 = vsel %vm143, %v146, %v147
  %v149 = vrot.slane %v16, 7
  %v150 = vrot.slane %v17, 7
  %v151 = vsel %vm143, %v149, %v150
  %v152 = vrot.slane %v18, 7
  %v153 = vrot.slane %v19, 7
  %v154 = vsel %vm143, %v152, %v153
  %v155 = vrot.slane %v20, 7
  %v156 = vrot.slane %v21, 7
  %v157 = vsel %vm143, %v155, %v156
  %v158 = vrot.slane %v22, 7
  %v159 = vrot.slane %v23, 7
  %v160 = vsel %vm143, %v158, %v159
  %v161 = vrot.slane %v24, 7
  %v162 = vrot.slane %v25, 7
  %v163 = vsel %vm143, %v161, %v162
  %v164 = vrot.slane %v26, 7
  %v165 = vrot.slane %v27, 7
  %v166 = vsel %vm143, %v164, %v165
  %v167 = vrot.slane %v28, 7
  %v168 = vrot.slane %v29, 7
  %v169 = vsel %vm143, %v167, %v168
  %v170 = vrot.slane %v30, 7
  %v171 = vrot.slane %v31, 7
  %v172 = vsel %vm143, %v170, %v171
  %v173 = vrot.slane %v32, 7
  %v174 = vrot.slane %v33, 7
  %v175 = vsel %vm143, %v173, %v174
  %v176 = vrot.slane %v34, 7
  %v177 = vrot.slane %v35, 7
  %v178 = vsel %vm143, %v176, %v177
  %v179 = vrot.slane %v36, 7
  %v180 = vrot.slane %v37, 7
  %v181 = vsel %vm143, %v179, %v180
  %v182 = vrot.slane %v38, 7
  %v183 = vrot.slane %v39, 7
  %v184 = vsel %vm143, %v182, %v183
  %v185 = vrot.slane %v40, 7
  %v186 = vrot.slane %v41, 7
  %v187 = vsel %vm143, %v185, %v186
  %v188 = vrot.slane %v42, 7
  %v189 = vrot.slane %v43, 7
  %v190 = vsel %vm143, %v188, %v189
  %v191 = vrot.slane %v44, 7
  %v192 = vrot.slane %v45, 7
  %v193 = vsel %vm143, %v191, %v192
  %v194 = vrot.slane %v46, 7
  %v195 = vrot.slane %v47, 7
  %v196 = vsel %vm143, %v194, %v195
  %v197 = vrot.slane %v48, 7
  %v198 = vrot.slane %v49, 7
  %v199 = vsel %vm143, %v197, %v198
  %v200 = vrot.slane %v50, 7
  %v201 = vrot.slane %v51, 7
  %v202 = vsel %vm143, %v200, %v201
  %v203 = vrot.slane %v52, 7
  %v204 = vrot.slane %v53, 7
  %v205 = vsel %vm143, %v203, %v204
  %v206 = vrot.slane %v54, 7
  %v207 = vrot.slane %v55, 7
  %v208 = vsel %vm143, %v206, %v207
  %v209 = vrot.slane %v56, 7
  %v210 = vrot.slane %v57, 7
  %v211 = vsel %vm143, %v209, %v210
  %v212 = vrot.slane %v58, 7
  %v213 = vrot.slane %v59, 7
  %v214 = vsel %vm143, %v212, %v213
  %v215 = vrot.slane %v60, 7
  %v216 = vrot.slane %v61, 7
  %v217 = vsel %vm143, %v215, %v216
  %v218 = vrot.slane %v62, 7
  %v219 = vrot.slane %v63, 7
  %v220 = vsel %vm143, %v218, %v219
  %v221 = vrot.slane %v64, 7
  %v222 = vrot.slane %v65, 7
  %v223 = vsel %vm143, %v221, %v222
  %v224 = vrot.slane %v66, 7
  %v225 = vrot.slane %v67, 7
  %v226 = vsel %vm143, %v224, %v225
  %v227 = vrot.slane %v68, 7
  %v228 = vrot.slane %v69, 7
  %v229 = vsel %vm143, %v227, %v228
  %v230 = vrot.slane %v70, 7
  %v231 = vrot.slane %v71, 7
  %v232 = vsel %vm143, %v230, %v231
  %v233 = vrot.slane %v72, 7
  %v234 = vrot.slane %v73, 7
  %v235 = vsel %vm143, %v233, %v234
  %v236 = vrot.slane %v74, 7
  %v237 = vrot.slane %v75, 7
  %v238 = vsel %vm143, %v236, %v237
  %v239 = vrot.slane %v76, 7
  %v240 = vrot.slane %v77, 7
  %v241 = vsel %vm143, %v239, %v240
  %v340 = vsel %vm143, 0.0, %v144
  %v341 = vsel %vm143, 0.0, %v146
  %v342 = vsel %vm143, 0.0, %v149
  %v343 = vsel %vm143, 0.0, %v152
  %v344 = vsel %vm143, 0.0, %v155
  %v345 = vsel %vm143, 0.0, %v158
  %v346 = vsel %vm143, 0.0, %v161
  %v347 = vsel %vm143, 0.0, %v164
  %v348 = vsel %vm143, 0.0, %v167
  %v349 = vsel %vm143, 0.0, %v170
  %v350 = vsel %vm143, 0.0, %v173
  %v351 = vsel %vm143, 0.0, %v176
  %v352 = vsel %vm143, 0.0, %v179
  %v353 = vsel %vm143, 0.0, %v182
  %v354 = vsel %vm143, 0.0, %v185
  %v355 = vsel %vm143, 0.0, %v188
  %v356 = vsel %vm143, 0.0, %v191
  %v357 = vsel %vm143, 0.0, %v194
  %v358 = vsel %vm143, 0.0, %v197
  %v359 = vsel %vm143, 0.0, %v200
  %v360 = vsel %vm143, 0.0, %v203
  %v361 = vsel %vm143, 0.0, %v206
  %v362 = vsel %vm143, 0.0, %v209
  %v363 = vsel %vm143, 0.0, %v212
  %v364 = vsel %vm143, 0.0, %v215
  %v365 = vsel %vm143, 0.0, %v218
  %v366 = vsel %vm143, 0.0, %v221
  %v367 = vsel %vm143, 0.0, %v224
  %v368 = vsel %vm143, 0.0, %v227
  %v369 = vsel %vm143, 0.0, %v230
  %v370 = vsel %vm143, 0.0, %v233
  %v371 = vsel %vm143, 0.0, %v236
  %v372 = vsel %vm143, 0.0, %v239
  %v373 = vsel %vm143, %v144, 0.0
  %v374 = vsel %vm143, %v147, 0.0
  %v375 = vsel %vm143, %v150, 0.0
  %v376 = vsel %vm143, %v153, 0.0
  %v377 = vsel %vm143, %v156, 0.0
  %v378 = vsel %vm143, %v159, 0.0
  %v379 = vsel %vm143, %v162, 0.0
  %v380 = vsel %vm143, %v165, 0.0
  %v381 = vsel %vm143, %v168, 0.0
  %v382 = vsel %vm143, %v171, 0.0
  %v383 = vsel %vm143, %v174, 0.0
  %v384 = vsel %vm143, %v177, 0.0
  %v385 = vsel %vm143, %v180, 0.0
  %v386 = vsel %vm143, %v183, 0.0
  %v387 = vsel %vm143, %v186, 0.0
  %v388 = vsel %vm143, %v189, 0.0
  %v389 = vsel %vm143, %v192, 0.0
  %v390 = vsel %vm143, %v195, 0.0
  %v391 = vsel %vm143, %v198, 0.0
  %v392 = vsel %vm143, %v201, 0.0
  %v393 = vsel %vm143, %v204, 0.0
  %v394 = vsel %vm143, %v207, 0.0
  %v395 = vsel %vm143, %v210, 0.0
  %v396 = vsel %vm143, %v213, 0.0
  %v397 = vsel %vm143, %v216, 0.0
  %v398 = vsel %vm143, %v219, 0.0
  %v399 = vsel %vm143, %v222, 0.0
  %v400 = vsel %vm143, %v225, 0.0
  %v401 = vsel %vm143, %v228, 0.0
  %v402 = vsel %vm143, %v231, 0.0
  %v403 = vsel %vm143, %v234, 0.0
  %v404 = vsel %vm143, %v237, 0.0
  %v405 = vsel %vm143, %v240, 0.0
  %v406 = vld [vmem:[%s1] sm:$0x7]
  %v407 = vld [vmem:[%s1 + $0x4] sm:$0x7]
  %v408 = vld [vmem:[%s1 + $0x8] sm:$0x7]
  %v409 = vld [vmem:[%s2] sm:$0x1]
  %v410 = vlaneseq
  %v411 = vshrl.u32 %v410, 7
  %v412 = vsub.s32 1, %v411
  %v413 = vrot.slane %v407, %v412
  %v414 = vmul.f32 %v341, %v413
  %v415 = vmul.f32 %v148, %v413
  %v416 = vmul.f32 %v374, %v413
  %v417 = vmul.f32 %v342, %v413
  %v418 = vmul.f32 %v151, %v413
  %v419 = vmul.f32 %v375, %v413
  %v420 = vmul.f32 %v343, %v413
  %v421 = vmul.f32 %v154, %v413
  %v422 = vmul.f32 %v376, %v413
  %v423 = vmul.f32 %v344, %v413
  %v424 = vmul.f32 %v157, %v413
  %v425 = vmul.f32 %v377, %v413
  %v426 = vmul.f32 %v345, %v413
  %v427 = vmul.f32 %v160, %v413
  %v428 = vmul.f32 %v378, %v413
  %v429 = vmul.f32 %v346, %v413
  %v430 = vmul.f32 %v163, %v413
  %v431 = vmul.f32 %v379, %v413
  %v432 = vmul.f32 %v347, %v413
  %v433 = vmul.f32 %v166, %v413
  %v434 = vmul.f32 %v380, %v413
  %v435 = vmul.f32 %v348, %v413
  %v436 = vmul.f32 %v169, %v413
  %v437 = vmul.f32 %v381, %v413
  %v438 = vmul.f32 %v349, %v413
  %v439 = vmul.f32 %v172, %v413
  %v440 = vmul.f32 %v382, %v413
  %v441 = vmul.f32 %v350, %v413
  %v442 = vmul.f32 %v175, %v413
  %v443 = vmul.f32 %v383, %v413
  %v444 = vmul.f32 %v351, %v413
  %v445 = vmul.f32 %v178, %v413
  %v446 = vmul.f32 %v384, %v413
  %v447 = vmul.f32 %v352, %v413
  %v448 = vmul.f32 %v181, %v413
  %v449 = vmul.f32 %v385, %v413
  %v450 = vmul.f32 %v353, %v413
  %v451 = vmul.f32 %v184, %v413
  %v452 = vmul.f32 %v386, %v413
  %v453 = vmul.f32 %v354, %v413
  %v454 = vmul.f32 %v187, %v413
  %v455 = vmul.f32 %v387, %v413
  %v456 = vmul.f32 %v355, %v413
  %v457 = vmul.f32 %v190, %v413
  %v458 = vmul.f32 %v388, %v413
  %v459 = vmul.f32 %v356, %v413
  %v460 = vmul.f32 %v193, %v413
  %v461 = vmul.f32 %v389, %v413
  %v462 = vmul.f32 %v357, %v413
  %v463 = vmul.f32 %v196, %v413
  %v464 = vmul.f32 %v390, %v413
  %v465 = vmul.f32 %v358, %v413
  %v466 = vmul.f32 %v199, %v413
  %v467 = vmul.f32 %v391, %v413
  %v468 = vmul.f32 %v359, %v413
  %v469 = vmul.f32 %v202, %v413
  %v470 = vmul.f32 %v392, %v413
  %v471 = vmul.f32 %v360, %v413
  %v472 = vmul.f32 %v205, %v413
  %v473 = vmul.f32 %v393, %v413
  %v474 = vmul.f32 %v361, %v413
  %v475 = vmul.f32 %v208, %v413
  %v476 = vmul.f32 %v394, %v413
  %v477 = vmul.f32 %v362, %v413
  %v478 = vmul.f32 %v211, %v413
  %v479 = vmul.f32 %v395, %v413
  %v480 = vmul.f32 %v363, %v413
  %v481 = vmul.f32 %v214, %v413
  %v482 = vmul.f32 %v396, %v413
  %v483 = vmul.f32 %v364, %v413
  %v484 = vmul.f32 %v217, %v413
  %v485 = vmul.f32 %v397, %v413
  %v486 = vmul.f32 %v365, %v413
  %v487 = vmul.f32 %v220, %v413
  %v488 = vmul.f32 %v398, %v413
  %v489 = vmul.f32 %v366, %v413
  %v490 = vmul.f32 %v223, %v413
  %v491 = vmul.f32 %v399, %v413
  %v492 = vmul.f32 %v367, %v413
  %v493 = vmul.f32 %v226, %v413
  %v494 = vmul.f32 %v400, %v413
  %v495 = vmul.f32 %v368, %v413
  %v496 = vmul.f32 %v229, %v413
  %v497 = vmul.f32 %v401, %v413
  %v498 = vmul.f32 %v369, %v413
  %v499 = vmul.f32 %v232, %v413
  %v500 = vmul.f32 %v402, %v413
  %v501 = vmul.f32 %v370, %v413
  %v502 = vmul.f32 %v235, %v413
  %v503 = vmul.f32 %v403, %v413
  %v504 = vmul.f32 %v371, %v413
  %v505 = vmul.f32 %v238, %v413
  %v506 = vmul.f32 %v404, %v413
  %v507 = vmul.f32 %v372, %v413
  %v508 = vmul.f32 %v241, %v413
  %v509 = vmul.f32 %v405, %v413
  %v511 = vlaneseq
  %v512 = vshrl.u32 %v511, 7
  %v513 = vsub.s32 0, %v512
  %v514 = vrot.slane %v409, %v513
  %v516 = vadd.f32 %v414, %v514
  %v517 = vadd.f32 %v415, %v514
  %v518 = vadd.f32 %v416, %v514
  %v519 = vadd.f32 %v417, %v514
  %v520 = vadd.f32 %v418, %v514
  %v521 = vadd.f32 %v419, %v514
  %v522 = vadd.f32 %v420, %v514
  %v523 = vadd.f32 %v421, %v514
  %v524 = vadd.f32 %v422, %v514
  %v525 = vadd.f32 %v423, %v514
  %v526 = vadd.f32 %v424, %v514
  %v527 = vadd.f32 %v425, %v514
  %v528 = vadd.f32 %v426, %v514
  %v529 = vadd.f32 %v427, %v514
  %v530 = vadd.f32 %v428, %v514
  %v531 = vadd.f32 %v429, %v514
  %v532 = vadd.f32 %v430, %v514
  %v533 = vadd.f32 %v431, %v514
  %v534 = vadd.f32 %v432, %v514
  %v535 = vadd.f32 %v433, %v514
  %v536 = vadd.f32 %v434, %v514
  %v537 = vadd.f32 %v435, %v514
  %v538 = vadd.f32 %v436, %v514
  %v539 = vadd.f32 %v437, %v514
  %v540 = vadd.f32 %v438, %v514
  %v541 = vadd.f32 %v439, %v514
  %v542 = vadd.f32 %v440, %v514
  %v543 = vadd.f32 %v441, %v514
  %v544 = vadd.f32 %v442, %v514
  %v545 = vadd.f32 %v443, %v514
  %v546 = vadd.f32 %v444, %v514
  %v547 = vadd.f32 %v445, %v514
  %v548 = vadd.f32 %v446, %v514
  %v549 = vadd.f32 %v447, %v514
  %v550 = vadd.f32 %v448, %v514
  %v551 = vadd.f32 %v449, %v514
  %v552 = vadd.f32 %v450, %v514
  %v553 = vadd.f32 %v451, %v514
  %v554 = vadd.f32 %v452, %v514
  %v555 = vadd.f32 %v453, %v514
  %v556 = vadd.f32 %v454, %v514
  %v557 = vadd.f32 %v455, %v514
  %v558 = vadd.f32 %v456, %v514
  %v559 = vadd.f32 %v457, %v514
  %v560 = vadd.f32 %v458, %v514
  %v561 = vadd.f32 %v459, %v514
  %v562 = vadd.f32 %v460, %v514
  %v563 = vadd.f32 %v461, %v514
  %v564 = vadd.f32 %v462, %v514
  %v565 = vadd.f32 %v463, %v514
  %v566 = vadd.f32 %v464, %v514
  %v567 = vadd.f32 %v465, %v514
  %v568 = vadd.f32 %v466, %v514
  %v569 = vadd.f32 %v467, %v514
  %v570 = vadd.f32 %v468, %v514
  %v571 = vadd.f32 %v469, %v514
  %v572 = vadd.f32 %v470, %v514
  %v573 = vadd.f32 %v471, %v514
  %v574 = vadd.f32 %v472, %v514
  %v575 = vadd.f32 %v473, %v514
  %v576 = vadd.f32 %v474, %v514
  %v577 = vadd.f32 %v475, %v514
  %v578 = vadd.f32 %v476, %v514
  %v579 = vadd.f32 %v477, %v514
  %v580 = vadd.f32 %v478, %v514
  %v581 = vadd.f32 %v479, %v514
  %v582 = vadd.f32 %v480, %v514
  %v583 = vadd.f32 %v481, %v514
  %v584 = vadd.f32 %v482, %v514
  %v585 = vadd.f32 %v483, %v514
  %v586 = vadd.f32 %v484, %v514
  %v587 = vadd.f32 %v485, %v514
  %v588 = vadd.f32 %v486, %v514
  %v589 = vadd.f32 %v487, %v514
  %v590 = vadd.f32 %v488, %v514
  %v591 = vadd.f32 %v489, %v514
  %v592 = vadd.f32 %v490, %v514
  %v593 = vadd.f32 %v491, %v514
  %v594 = vadd.f32 %v492, %v514
  %v595 = vadd.f32 %v493, %v514
  %v596 = vadd.f32 %v494, %v514
  %v597 = vadd.f32 %v495, %v514
  %v598 = vadd.f32 %v496, %v514
  %v599 = vadd.f32 %v497, %v514
  %v600 = vadd.f32 %v498, %v514
  %v601 = vadd.f32 %v499, %v514
  %v602 = vadd.f32 %v500, %v514
  %v603 = vadd.f32 %v501, %v514
  %v604 = vadd.f32 %v502, %v514
  %v605 = vadd.f32 %v503, %v514
  %v606 = vadd.f32 %v504, %v514
  %v607 = vadd.f32 %v505, %v514
  %v608 = vadd.f32 %v506, %v514
  %v609 = vadd.f32 %v507, %v514
  %v610 = vadd.f32 %v508, %v514
  %v611 = vadd.f32 %v509, %v514
  %v612 = vlaneseq
  %v613 = vshrl.u32 %v612, 7
  %v614 = vsub.s32 0, %v613
  %v615 = vrot.slane %v406, %v614
  %v616 = vmul.f32 %v340, %v615
  %v617 = vmul.f32 %v145, %v615
  %v618 = vmul.f32 %v341, %v615
  %v619 = vmul.f32 %v148, %v615
  %v620 = vmul.f32 %v342, %v615
  %v621 = vmul.f32 %v151, %v615
  %v622 = vmul.f32 %v343, %v615
  %v623 = vmul.f32 %v154, %v615
  %v624 = vmul.f32 %v344, %v615
  %v625 = vmul.f32 %v157, %v615
  %v626 = vmul.f32 %v345, %v615
  %v627 = vmul.f32 %v160, %v615
  %v628 = vmul.f32 %v346, %v615
  %v629 = vmul.f32 %v163, %v615
  %v630 = vmul.f32 %v347, %v615
  %v631 = vmul.f32 %v166, %v615
  %v632 = vmul.f32 %v348, %v615
  %v633 = vmul.f32 %v169, %v615
  %v634 = vmul.f32 %v349, %v615
  %v635 = vmul.f32 %v172, %v615
  %v636 = vmul.f32 %v350, %v615
  %v637 = vmul.f32 %v175, %v615
  %v638 = vmul.f32 %v351, %v615
  %v639 = vmul.f32 %v178, %v615
  %v640 = vmul.f32 %v352, %v615
  %v641 = vmul.f32 %v181, %v615
  %v642 = vmul.f32 %v353, %v615
  %v643 = vmul.f32 %v184, %v615
  %v644 = vmul.f32 %v354, %v615
  %v645 = vmul.f32 %v187, %v615
  %v646 = vmul.f32 %v355, %v615
  %v647 = vmul.f32 %v190, %v615
  %v648 = vmul.f32 %v357, %v615
  %v649 = vmul.f32 %v196, %v615
  %v650 = vmul.f32 %v358, %v615
  %v651 = vmul.f32 %v199, %v615
  %v652 = vmul.f32 %v359, %v615
  %v653 = vmul.f32 %v202, %v615
  %v654 = vmul.f32 %v360, %v615
  %v655 = vmul.f32 %v205, %v615
  %v656 = vmul.f32 %v361, %v615
  %v657 = vmul.f32 %v208, %v615
  %v658 = vmul.f32 %v362, %v615
  %v659 = vmul.f32 %v211, %v615
  %v660 = vmul.f32 %v363, %v615
  %v661 = vmul.f32 %v214, %v615
  %v662 = vmul.f32 %v364, %v615
  %v663 = vmul.f32 %v217, %v615
  %v664 = vmul.f32 %v365, %v615
  %v665 = vmul.f32 %v220, %v615
  %v666 = vmul.f32 %v366, %v615
  %v667 = vmul.f32 %v223, %v615
  %v668 = vmul.f32 %v367, %v615
  %v669 = vmul.f32 %v226, %v615
  %v670 = vmul.f32 %v368, %v615
  %v671 = vmul.f32 %v229, %v615
  %v672 = vmul.f32 %v369, %v615
  %v673 = vmul.f32 %v232, %v615
  %v674 = vmul.f32 %v370, %v615
  %v675 = vmul.f32 %v235, %v615
  %v676 = vmul.f32 %v371, %v615
  %v677 = vmul.f32 %v238, %v615
  %v740 = vrot.slane %v616, 7
  %v741 = vrot.slane %v617, 7
  %v742 = vsel %vm143, %v740, %v741
  %v743 = vrot.slane %v618, 7
  %v744 = vrot.slane %v619, 7
  %v745 = vsel %vm143, %v743, %v744
  %v746 = vrot.slane %v620, 7
  %v747 = vrot.slane %v621, 7
  %v748 = vsel %vm143, %v746, %v747
  %v749 = vrot.slane %v622, 7
  %v750 = vrot.slane %v623, 7
  %v751 = vsel %vm143, %v749, %v750
  %v752 = vrot.slane %v624, 7
  %v753 = vrot.slane %v625, 7
  %v754 = vsel %vm143, %v752, %v753
  %v755 = vrot.slane %v626, 7
  %v756 = vrot.slane %v627, 7
  %v757 = vsel %vm143, %v755, %v756
  %v758 = vrot.slane %v628, 7
  %v759 = vrot.slane %v629, 7
  %v760 = vsel %vm143, %v758, %v759
  %v761 = vrot.slane %v630, 7
  %v762 = vrot.slane %v631, 7
  %v763 = vsel %vm143, %v761, %v762
  %v764 = vrot.slane %v632, 7
  %v765 = vrot.slane %v633, 7
  %v766 = vsel %vm143, %v764, %v765
  %v767 = vrot.slane %v634, 7
  %v768 = vrot.slane %v635, 7
  %v769 = vsel %vm143, %v767, %v768
  %v770 = vrot.slane %v636, 7
  %v771 = vrot.slane %v637, 7
  %v772 = vsel %vm143, %v770, %v771
  %v773 = vrot.slane %v638, 7
  %v774 = vrot.slane %v639, 7
  %v775 = vsel %vm143, %v773, %v774
  %v776 = vrot.slane %v640, 7
  %v777 = vrot.slane %v641, 7
  %v778 = vsel %vm143, %v776, %v777
  %v779 = vrot.slane %v642, 7
  %v780 = vrot.slane %v643, 7
  %v781 = vsel %vm143, %v779, %v780
  %v782 = vrot.slane %v644, 7
  %v783 = vrot.slane %v645, 7
  %v784 = vsel %vm143, %v782, %v783
  %v785 = vrot.slane %v646, 7
  %v786 = vrot.slane %v647, 7
  %v787 = vsel %vm143, %v785, %v786
  %v788 = vrot.slane %v648, 7
  %v789 = vrot.slane %v649, 7
  %v790 = vsel %vm143, %v788, %v789
  %v791 = vrot.slane %v650, 7
  %v792 = vrot.slane %v651, 7
  %v793 = vsel %vm143, %v791, %v792
  %v794 = vrot.slane %v652, 7
  %v795 = vrot.slane %v653, 7
  %v796 = vsel %vm143, %v794, %v795
  %v797 = vrot.slane %v654, 7
  %v798 = vrot.slane %v655, 7
  %v799 = vsel %vm143, %v797, %v798
  %v800 = vrot.slane %v656, 7
  %v801 = vrot.slane %v657, 7
  %v802 = vsel %vm143, %v800, %v801
  %v803 = vrot.slane %v658, 7
  %v804 = vrot.slane %v659, 7
  %v805 = vsel %vm143, %v803, %v804
  %v806 = vrot.slane %v660, 7
  %v807 = vrot.slane %v661, 7
  %v808 = vsel %vm143, %v806, %v807
  %v809 = vrot.slane %v662, 7
  %v810 = vrot.slane %v663, 7
  %v811 = vsel %vm143, %v809, %v810
  %v812 = vrot.slane %v664, 7
  %v813 = vrot.slane %v665, 7
  %v814 = vsel %vm143, %v812, %v813
  %v815 = vrot.slane %v666, 7
  %v816 = vrot.slane %v667, 7
  %v817 = vsel %vm143, %v815, %v816
  %v818 = vrot.slane %v668, 7
  %v819 = vrot.slane %v669, 7
  %v820 = vsel %vm143, %v818, %v819
  %v821 = vrot.slane %v670, 7
  %v822 = vrot.slane %v671, 7
  %v823 = vsel %vm143, %v821, %v822
  %v824 = vrot.slane %v672, 7
  %v825 = vrot.slane %v673, 7
  %v826 = vsel %vm143, %v824, %v825
  %v827 = vrot.slane %v674, 7
  %v828 = vrot.slane %v675, 7
  %v829 = vsel %vm143, %v827, %v828
  %v830 = vrot.slane %v676, 7
  %v831 = vrot.slane %v677, 7
  %v832 = vsel %vm143, %v830, %v831
  %v926 = vadd.f32 %v516, %v740
  %v927 = vadd.f32 %v517, %v742
  %v928 = vadd.f32 %v518, %v741
  %v929 = vadd.f32 %v519, %v743
  %v930 = vadd.f32 %v520, %v745
  %v931 = vadd.f32 %v521, %v744
  %v932 = vadd.f32 %v522, %v746
  %v933 = vadd.f32 %v523, %v748
  %v934 = vadd.f32 %v524, %v747
  %v935 = vadd.f32 %v525, %v749
  %v936 = vadd.f32 %v526, %v751
  %v937 = vadd.f32 %v527, %v750
  %v938 = vadd.f32 %v528, %v752
  %v939 = vadd.f32 %v529, %v754
  %v940 = vadd.f32 %v530, %v753
  %v941 = vadd.f32 %v531, %v755
  %v942 = vadd.f32 %v532, %v757
  %v943 = vadd.f32 %v533, %v756
  %v944 = vadd.f32 %v534, %v758
  %v945 = vadd.f32 %v535, %v760
  %v946 = vadd.f32 %v536, %v759
  %v947 = vadd.f32 %v537, %v761
  %v948 = vadd.f32 %v538, %v763
  %v949 = vadd.f32 %v539, %v762
  %v950 = vadd.f32 %v540, %v764
  %v951 = vadd.f32 %v541, %v766
  %v952 = vadd.f32 %v542, %v765
  %v953 = vadd.f32 %v543, %v767
  %v954 = vadd.f32 %v544, %v769
  %v955 = vadd.f32 %v545, %v768
  %v956 = vadd.f32 %v546, %v770
  %v957 = vadd.f32 %v547, %v772
  %v958 = vadd.f32 %v548, %v771
  %v959 = vadd.f32 %v549, %v773
  %v960 = vadd.f32 %v550, %v775
  %v961 = vadd.f32 %v551, %v774
  %v962 = vadd.f32 %v552, %v776
  %v963 = vadd.f32 %v553, %v778
  %v964 = vadd.f32 %v554, %v777
  %v965 = vadd.f32 %v555, %v779
  %v966 = vadd.f32 %v556, %v781
  %v967 = vadd.f32 %v557, %v780
  %v968 = vadd.f32 %v558, %v782
  %v969 = vadd.f32 %v559, %v784
  %v970 = vadd.f32 %v560, %v783
  %v971 = vadd.f32 %v561, %v785
  %v972 = vadd.f32 %v562, %v787
  %v973 = vadd.f32 %v563, %v786
  %v974 = vadd.f32 %v564, %v740
  %v975 = vadd.f32 %v565, %v742
  %v976 = vadd.f32 %v566, %v741
  %v977 = vadd.f32 %v567, %v788
  %v978 = vadd.f32 %v568, %v790
  %v979 = vadd.f32 %v569, %v789
  %v980 = vadd.f32 %v570, %v791
  %v981 = vadd.f32 %v571, %v793
  %v982 = vadd.f32 %v572, %v792
  %v983 = vadd.f32 %v573, %v794
  %v984 = vadd.f32 %v574, %v796
  %v985 = vadd.f32 %v575, %v795
  %v986 = vadd.f32 %v576, %v797
  %v987 = vadd.f32 %v577, %v799
  %v988 = vadd.f32 %v578, %v798
  %v989 = vadd.f32 %v579, %v800
  %v990 = vadd.f32 %v580, %v802
  %v991 = vadd.f32 %v581, %v801
  %v992 = vadd.f32 %v582, %v803
  %v993 = vadd.f32 %v583, %v805
  %v994 = vadd.f32 %v584, %v804
  %v995 = vadd.f32 %v585, %v806
  %v996 = vadd.f32 %v586, %v808
  %v997 = vadd.f32 %v587, %v807
  %v998 = vadd.f32 %v588, %v809
  %v999 = vadd.f32 %v589, %v811
  %v1000 = vadd.f32 %v590, %v810
  %v1001 = vadd.f32 %v591, %v812
  %v1002 = vadd.f32 %v592, %v814
  %v1003 = vadd.f32 %v593, %v813
  %v1004 = vadd.f32 %v594, %v815
  %v1005 = vadd.f32 %v595, %v817
  %v1006 = vadd.f32 %v596, %v816
  %v1007 = vadd.f32 %v597, %v818
  %v1008 = vadd.f32 %v598, %v820
  %v1009 = vadd.f32 %v599, %v819
  %v1010 = vadd.f32 %v600, %v821
  %v1011 = vadd.f32 %v601, %v823
  %v1012 = vadd.f32 %v602, %v822
  %v1013 = vadd.f32 %v603, %v824
  %v1014 = vadd.f32 %v604, %v826
  %v1015 = vadd.f32 %v605, %v825
  %v1016 = vadd.f32 %v606, %v827
  %v1017 = vadd.f32 %v607, %v829
  %v1018 = vadd.f32 %v608, %v828
  %v1019 = vadd.f32 %v609, %v830
  %v1020 = vadd.f32 %v610, %v832
  %v1021 = vadd.f32 %v611, %v831
  %v1022 = vlaneseq
  %v1023 = vshrl.u32 %v1022, 7
  %v1024 = vsub.s32 1, %v1023
  %v1025 = vrot.slane %v406, %v1024
  %v1026 = vmul.f32 %v340, %v1025
  %v1027 = vmul.f32 %v145, %v1025
  %v1028 = vmul.f32 %v373, %v1025
  %v1029 = vmul.f32 %v341, %v1025
  %v1030 = vmul.f32 %v148, %v1025
  %v1031 = vmul.f32 %v374, %v1025
  %v1032 = vmul.f32 %v342, %v1025
  %v1033 = vmul.f32 %v151, %v1025
  %v1034 = vmul.f32 %v375, %v1025
  %v1035 = vmul.f32 %v343, %v1025
  %v1036 = vmul.f32 %v154, %v1025
  %v1037 = vmul.f32 %v376, %v1025
  %v1038 = vmul.f32 %v344, %v1025
  %v1039 = vmul.f32 %v157, %v1025
  %v1040 = vmul.f32 %v377, %v1025
  %v1041 = vmul.f32 %v345, %v1025
  %v1042 = vmul.f32 %v160, %v1025
  %v1043 = vmul.f32 %v378, %v1025
  %v1044 = vmul.f32 %v346, %v1025
  %v1045 = vmul.f32 %v163, %v1025
  %v1046 = vmul.f32 %v379, %v1025
  %v1047 = vmul.f32 %v347, %v1025
  %v1048 = vmul.f32 %v166, %v1025
  %v1049 = vmul.f32 %v380, %v1025
  %v1050 = vmul.f32 %v348, %v1025
  %v1051 = vmul.f32 %v169, %v1025
  %v1052 = vmul.f32 %v381, %v1025
  %v1053 = vmul.f32 %v349, %v1025
  %v1054 = vmul.f32 %v172, %v1025
  %v1055 = vmul.f32 %v382, %v1025
  %v1056 = vmul.f32 %v350, %v1025
  %v1057 = vmul.f32 %v175, %v1025
  %v1058 = vmul.f32 %v383, %v1025
  %v1059 = vmul.f32 %v351, %v1025
  %v1060 = vmul.f32 %v178, %v1025
  %v1061 = vmul.f32 %v384, %v1025
  %v1062 = vmul.f32 %v352, %v1025
  %v1063 = vmul.f32 %v181, %v1025
  %v1064 = vmul.f32 %v385, %v1025
  %v1065 = vmul.f32 %v353, %v1025
  %v1066 = vmul.f32 %v184, %v1025
  %v1067 = vmul.f32 %v386, %v1025
  %v1068 = vmul.f32 %v354, %v1025
  %v1069 = vmul.f32 %v187, %v1025
  %v1070 = vmul.f32 %v387, %v1025
  %v1071 = vmul.f32 %v355, %v1025
  %v1072 = vmul.f32 %v190, %v1025
  %v1073 = vmul.f32 %v388, %v1025
  %v1074 = vmul.f32 %v357, %v1025
  %v1075 = vmul.f32 %v196, %v1025
  %v1076 = vmul.f32 %v390, %v1025
  %v1077 = vmul.f32 %v358, %v1025
  %v1078 = vmul.f32 %v199, %v1025
  %v1079 = vmul.f32 %v391, %v1025
  %v1080 = vmul.f32 %v359, %v1025
  %v1081 = vmul.f32 %v202, %v1025
  %v1082 = vmul.f32 %v392, %v1025
  %v1083 = vmul.f32 %v360, %v1025
  %v1084 = vmul.f32 %v205, %v1025
  %v1085 = vmul.f32 %v393, %v1025
  %v1086 = vmul.f32 %v361, %v1025
  %v1087 = vmul.f32 %v208, %v1025
  %v1088 = vmul.f32 %v394, %v1025
  %v1089 = vmul.f32 %v362, %v1025
  %v1090 = vmul.f32 %v211, %v1025
  %v1091 = vmul.f32 %v395, %v1025
  %v1092 = vmul.f32 %v363, %v1025
  %v1093 = vmul.f32 %v214, %v1025
  %v1094 = vmul.f32 %v396, %v1025
  %v1095 = vmul.f32 %v364, %v1025
  %v1096 = vmul.f32 %v217, %v1025
  %v1097 = vmul.f32 %v397, %v1025
  %v1098 = vmul.f32 %v365, %v1025
  %v1099 = vmul.f32 %v220, %v1025
  %v1100 = vmul.f32 %v398, %v1025
  %v1101 = vmul.f32 %v366, %v1025
  %v1102 = vmul.f32 %v223, %v1025
  %v1103 = vmul.f32 %v399, %v1025
  %v1104 = vmul.f32 %v367, %v1025
  %v1105 = vmul.f32 %v226, %v1025
  %v1106 = vmul.f32 %v400, %v1025
  %v1107 = vmul.f32 %v368, %v1025
  %v1108 = vmul.f32 %v229, %v1025
  %v1109 = vmul.f32 %v401, %v1025
  %v1110 = vmul.f32 %v369, %v1025
  %v1111 = vmul.f32 %v232, %v1025
  %v1112 = vmul.f32 %v402, %v1025
  %v1113 = vmul.f32 %v370, %v1025
  %v1114 = vmul.f32 %v235, %v1025
  %v1115 = vmul.f32 %v403, %v1025
  %v1116 = vmul.f32 %v371, %v1025
  %v1117 = vmul.f32 %v238, %v1025
  %v1118 = vmul.f32 %v404, %v1025
  %v1119 = vadd.f32 %v926, %v1026
  %v1120 = vadd.f32 %v927, %v1027
  %v1121 = vadd.f32 %v928, %v1028
  %v1122 = vadd.f32 %v929, %v1029
  %v1123 = vadd.f32 %v930, %v1030
  %v1124 = vadd.f32 %v931, %v1031
  %v1125 = vadd.f32 %v932, %v1032
  %v1126 = vadd.f32 %v933, %v1033
  %v1127 = vadd.f32 %v934, %v1034
  %v1128 = vadd.f32 %v935, %v1035
  %v1129 = vadd.f32 %v936, %v1036
  %v1130 = vadd.f32 %v937, %v1037
  %v1131 = vadd.f32 %v938, %v1038
  %v1132 = vadd.f32 %v939, %v1039
  %v1133 = vadd.f32 %v940, %v1040
  %v1134 = vadd.f32 %v941, %v1041
  %v1135 = vadd.f32 %v942, %v1042
  %v1136 = vadd.f32 %v943, %v1043
  %v1137 = vadd.f32 %v944, %v1044
  %v1138 = vadd.f32 %v945, %v1045
  %v1139 = vadd.f32 %v946, %v1046
  %v1140 = vadd.f32 %v947, %v1047
  %v1141 = vadd.f32 %v948, %v1048
  %v1142 = vadd.f32 %v949, %v1049
  %v1143 = vadd.f32 %v950, %v1050
  %v1144 = vadd.f32 %v951, %v1051
  %v1145 = vadd.f32 %v952, %v1052
  %v1146 = vadd.f32 %v953, %v1053
  %v1147 = vadd.f32 %v954, %v1054
  %v1148 = vadd.f32 %v955, %v1055
  %v1149 = vadd.f32 %v956, %v1056
  %v1150 = vadd.f32 %v957, %v1057
  %v1151 = vadd.f32 %v958, %v1058
  %v1152 = vadd.f32 %v959, %v1059
  %v1153 = vadd.f32 %v960, %v1060
  %v1154 = vadd.f32 %v961, %v1061
  %v1155 = vadd.f32 %v962, %v1062
  %v1156 = vadd.f32 %v963, %v1063
  %v1157 = vadd.f32 %v964, %v1064
  %v1158 = vadd.f32 %v965, %v1065
  %v1159 = vadd.f32 %v966, %v1066
  %v1160 = vadd.f32 %v967, %v1067
  %v1161 = vadd.f32 %v968, %v1068
  %v1162 = vadd.f32 %v969, %v1069
  %v1163 = vadd.f32 %v970, %v1070
  %v1164 = vadd.f32 %v971, %v1071
  %v1165 = vadd.f32 %v972, %v1072
  %v1166 = vadd.f32 %v973, %v1073
  %v1167 = vadd.f32 %v974, %v1026
  %v1168 = vadd.f32 %v975, %v1027
  %v1169 = vadd.f32 %v976, %v1028
  %v1170 = vadd.f32 %v977, %v1074
  %v1171 = vadd.f32 %v978, %v1075
  %v1172 = vadd.f32 %v979, %v1076
  %v1173 = vadd.f32 %v980, %v1077
  %v1174 = vadd.f32 %v981, %v1078
  %v1175 = vadd.f32 %v982, %v1079
  %v1176 = vadd.f32 %v983, %v1080
  %v1177 = vadd.f32 %v984, %v1081
  %v1178 = vadd.f32 %v985, %v1082
  %v1179 = vadd.f32 %v986, %v1083
  %v1180 = vadd.f32 %v987, %v1084
  %v1181 = vadd.f32 %v988, %v1085
  %v1182 = vadd.f32 %v989, %v1086
  %v1183 = vadd.f32 %v990, %v1087
  %v1184 = vadd.f32 %v991, %v1088
  %v1185 = vadd.f32 %v992, %v1089
  %v1186 = vadd.f32 %v993, %v1090
  %v1187 = vadd.f32 %v994, %v1091
  %v1188 = vadd.f32 %v995, %v1092
  %v1189 = vadd.f32 %v996, %v1093
  %v1190 = vadd.f32 %v997, %v1094
  %v1191 = vadd.f32 %v998, %v1095
  %v1192 = vadd.f32 %v999, %v1096
  %v1193 = vadd.f32 %v1000, %v1097
  %v1194 = vadd.f32 %v1001, %v1098
  %v1195 = vadd.f32 %v1002, %v1099
  %v1196 = vadd.f32 %v1003, %v1100
  %v1197 = vadd.f32 %v1004, %v1101
  %v1198 = vadd.f32 %v1005, %v1102
  %v1199 = vadd.f32 %v1006, %v1103
  %v1200 = vadd.f32 %v1007, %v1104
  %v1201 = vadd.f32 %v1008, %v1105
  %v1202 = vadd.f32 %v1009, %v1106
  %v1203 = vadd.f32 %v1010, %v1107
  %v1204 = vadd.f32 %v1011, %v1108
  %v1205 = vadd.f32 %v1012, %v1109
  %v1206 = vadd.f32 %v1013, %v1110
  %v1207 = vadd.f32 %v1014, %v1111
  %v1208 = vadd.f32 %v1015, %v1112
  %v1209 = vadd.f32 %v1016, %v1113
  %v1210 = vadd.f32 %v1017, %v1114
  %v1211 = vadd.f32 %v1018, %v1115
  %v1212 = vadd.f32 %v1019, %v1116
  %v1213 = vadd.f32 %v1020, %v1117
  %v1214 = vadd.f32 %v1021, %v1118
  %v1215 = vlaneseq
  %v1216 = vshrl.u32 %v1215, 7
  %v1217 = vsub.s32 2, %v1216
  %v1218 = vrot.slane %v406, %v1217
  %v1219 = vmul.f32 %v340, %v1218
  %v1220 = vmul.f32 %v145, %v1218
  %v1221 = vmul.f32 %v373, %v1218
  %v1222 = vmul.f32 %v341, %v1218
  %v1223 = vmul.f32 %v148, %v1218
  %v1224 = vmul.f32 %v374, %v1218
  %v1225 = vmul.f32 %v342, %v1218
  %v1226 = vmul.f32 %v151, %v1218
  %v1227 = vmul.f32 %v375, %v1218
  %v1228 = vmul.f32 %v343, %v1218
  %v1229 = vmul.f32 %v154, %v1218
  %v1230 = vmul.f32 %v376, %v1218
  %v1231 = vmul.f32 %v344, %v1218
  %v1232 = vmul.f32 %v157, %v1218
  %v1233 = vmul.f32 %v377, %v1218
  %v1234 = vmul.f32 %v345, %v1218
  %v1235 = vmul.f32 %v160, %v1218
  %v1236 = vmul.f32 %v378, %v1218
  %v1237 = vmul.f32 %v346, %v1218
  %v1238 = vmul.f32 %v163, %v1218
  %v1239 = vmul.f32 %v379, %v1218
  %v1240 = vmul.f32 %v347, %v1218
  %v1241 = vmul.f32 %v166, %v1218
  %v1242 = vmul.f32 %v380, %v1218
  %v1243 = vmul.f32 %v348, %v1218
  %v1244 = vmul.f32 %v169, %v1218
  %v1245 = vmul.f32 %v381, %v1218
  %v1246 = vmul.f32 %v349, %v1218
  %v1247 = vmul.f32 %v172, %v1218
  %v1248 = vmul.f32 %v382, %v1218
  %v1249 = vmul.f32 %v350, %v1218
  %v1250 = vmul.f32 %v175, %v1218
  %v1251 = vmul.f32 %v383, %v1218
  %v1252 = vmul.f32 %v351, %v1218
  %v1253 = vmul.f32 %v178, %v1218
  %v1254 = vmul.f32 %v384, %v1218
  %v1255 = vmul.f32 %v352, %v1218
  %v1256 = vmul.f32 %v181, %v1218
  %v1257 = vmul.f32 %v385, %v1218
  %v1258 = vmul.f32 %v353, %v1218
  %v1259 = vmul.f32 %v184, %v1218
  %v1260 = vmul.f32 %v386, %v1218
  %v1261 = vmul.f32 %v354, %v1218
  %v1262 = vmul.f32 %v187, %v1218
  %v1263 = vmul.f32 %v387, %v1218
  %v1264 = vmul.f32 %v355, %v1218
  %v1265 = vmul.f32 %v190, %v1218
  %v1266 = vmul.f32 %v388, %v1218
  %v1267 = vmul.f32 %v357, %v1218
  %v1268 = vmul.f32 %v196, %v1218
  %v1269 = vmul.f32 %v390, %v1218
  %v1270 = vmul.f32 %v358, %v1218
  %v1271 = vmul.f32 %v199, %v1218
  %v1272 = vmul.f32 %v391, %v1218
  %v1273 = vmul.f32 %v359, %v1218
  %v1274 = vmul.f32 %v202, %v1218
  %v1275 = vmul.f32 %v392, %v1218
  %v1276 = vmul.f32 %v360, %v1218
  %v1277 = vmul.f32 %v205, %v1218
  %v1278 = vmul.f32 %v393, %v1218
  %v1279 = vmul.f32 %v361, %v1218
  %v1280 = vmul.f32 %v208, %v1218
  %v1281 = vmul.f32 %v394, %v1218
  %v1282 = vmul.f32 %v362, %v1218
  %v1283 = vmul.f32 %v211, %v1218
  %v1284 = vmul.f32 %v395, %v1218
  %v1285 = vmul.f32 %v363, %v1218
  %v1286 = vmul.f32 %v214, %v1218
  %v1287 = vmul.f32 %v396, %v1218
  %v1288 = vmul.f32 %v364, %v1218
  %v1289 = vmul.f32 %v217, %v1218
  %v1290 = vmul.f32 %v397, %v1218
  %v1291 = vmul.f32 %v365, %v1218
  %v1292 = vmul.f32 %v220, %v1218
  %v1293 = vmul.f32 %v398, %v1218
  %v1294 = vmul.f32 %v366, %v1218
  %v1295 = vmul.f32 %v223, %v1218
  %v1296 = vmul.f32 %v399, %v1218
  %v1297 = vmul.f32 %v367, %v1218
  %v1298 = vmul.f32 %v226, %v1218
  %v1299 = vmul.f32 %v400, %v1218
  %v1300 = vmul.f32 %v368, %v1218
  %v1301 = vmul.f32 %v229, %v1218
  %v1302 = vmul.f32 %v401, %v1218
  %v1303 = vmul.f32 %v369, %v1218
  %v1304 = vmul.f32 %v232, %v1218
  %v1305 = vmul.f32 %v402, %v1218
  %v1306 = vmul.f32 %v370, %v1218
  %v1307 = vmul.f32 %v235, %v1218
  %v1308 = vmul.f32 %v403, %v1218
  %v1309 = vmul.f32 %v371, %v1218
  %v1310 = vmul.f32 %v238, %v1218
  %v1311 = vmul.f32 %v404, %v1218
  %vm1405 = vcmask 1046528
  %v1406 = vrot.slane %v1219, 1
  %v1407 = vrot.slane %v1220, 1
  %v1408 = vsel %vm1405, %v1406, %v1407
  %v1409 = vrot.slane %v1221, 1
  %v1410 = vsel %vm1405, %v1407, %v1409
  %v1411 = vrot.slane %v1222, 1
  %v1412 = vrot.slane %v1223, 1
  %v1413 = vsel %vm1405, %v1411, %v1412
  %v1414 = vrot.slane %v1224, 1
  %v1415 = vsel %vm1405, %v1412, %v1414
  %v1416 = vrot.slane %v1225, 1
  %v1417 = vrot.slane %v1226, 1
  %v1418 = vsel %vm1405, %v1416, %v1417
  %v1419 = vrot.slane %v1227, 1
  %v1420 = vsel %vm1405, %v1417, %v1419
  %v1421 = vrot.slane %v1228, 1
  %v1422 = vrot.slane %v1229, 1
  %v1423 = vsel %vm1405, %v1421, %v1422
  %v1424 = vrot.slane %v1230, 1
  %v1425 = vsel %vm1405, %v1422, %v1424
  %v1426 = vrot.slane %v1231, 1
  %v1427 = vrot.slane %v1232, 1
  %v1428 = vsel %vm1405, %v1426, %v1427
  %v1429 = vrot.slane %v1233, 1
  %v1430 = vsel %vm1405, %v1427, %v1429
  %v1431 = vrot.slane %v1234, 1
  %v1432 = vrot.slane %v1235, 1
  %v1433 = vsel %vm1405, %v1431, %v1432
  %v1434 = vrot.slane %v1236, 1
  %v1435 = vsel %vm1405, %v1432, %v1434
  %v1436 = vrot.slane %v1237, 1
  %v1437 = vrot.slane %v1238, 1
  %v1438 = vsel %vm1405, %v1436, %v1437
  %v1439 = vrot.slane %v1239, 1
  %v1440 = vsel %vm1405, %v1437, %v1439
  %v1441 = vrot.slane %v1240, 1
  %v1442 = vrot.slane %v1241, 1
  %v1443 = vsel %vm1405, %v1441, %v1442
  %v1444 = vrot.slane %v1242, 1
  %v1445 = vsel %vm1405, %v1442, %v1444
  %v1446 = vrot.slane %v1243, 1
  %v1447 = vrot.slane %v1244, 1
  %v1448 = vsel %vm1405, %v1446, %v1447
  %v1449 = vrot.slane %v1245, 1
  %v1450 = vsel %vm1405, %v1447, %v1449
  %v1451 = vrot.slane %v1246, 1
  %v1452 = vrot.slane %v1247, 1
  %v1453 = vsel %vm1405, %v1451, %v1452
  %v1454 = vrot.slane %v1248, 1
  %v1455 = vsel %vm1405, %v1452, %v1454
  %v1456 = vrot.slane %v1249, 1
  %v1457 = vrot.slane %v1250, 1
  %v1458 = vsel %vm1405, %v1456, %v1457
  %v1459 = vrot.slane %v1251, 1
  %v1460 = vsel %vm1405, %v1457, %v1459
  %v1461 = vrot.slane %v1252, 1
  %v1462 = vrot.slane %v1253, 1
  %v1463 = vsel %vm1405, %v1461, %v1462
  %v1464 = vrot.slane %v1254, 1
  %v1465 = vsel %vm1405, %v1462, %v1464
  %v1466 = vrot.slane %v1255, 1
  %v1467 = vrot.slane %v1256, 1
  %v1468 = vsel %vm1405, %v1466, %v1467
  %v1469 = vrot.slane %v1257, 1
  %v1470 = vsel %vm1405, %v1467, %v1469
  %v1471 = vrot.slane %v1258, 1
  %v1472 = vrot.slane %v1259, 1
  %v1473 = vsel %vm1405, %v1471, %v1472
  %v1474 = vrot.slane %v1260, 1
  %v1475 = vsel %vm1405, %v1472, %v1474
  %v1476 = vrot.slane %v1261, 1
  %v1477 = vrot.slane %v1262, 1
  %v1478 = vsel %vm1405, %v1476, %v1477
  %v1479 = vrot.slane %v1263, 1
  %v1480 = vsel %vm1405, %v1477, %v1479
  %v1481 = vrot.slane %v1264, 1
  %v1482 = vrot.slane %v1265, 1
  %v1483 = vsel %vm1405, %v1481, %v1482
  %v1484 = vrot.slane %v1266, 1
  %v1485 = vsel %vm1405, %v1482, %v1484
  %v1486 = vrot.slane %v1267, 1
  %v1487 = vrot.slane %v1268, 1
  %v1488 = vsel %vm1405, %v1486, %v1487
  %v1489 = vrot.slane %v1269, 1
  %v1490 = vsel %vm1405, %v1487, %v1489
  %v1491 = vrot.slane %v1270, 1
  %v1492 = vrot.slane %v1271, 1
  %v1493 = vsel %vm1405, %v1491, %v1492
  %v1494 = vrot.slane %v1272, 1
  %v1495 = vsel %vm1405, %v1492, %v1494
  %v1496 = vrot.slane %v1273, 1
  %v1497 = vrot.slane %v1274, 1
  %v1498 = vsel %vm1405, %v1496, %v1497
  %v1499 = vrot.slane %v1275, 1
  %v1500 = vsel %vm1405, %v1497, %v1499
  %v1501 = vrot.slane %v1276, 1
  %v1502 = vrot.slane %v1277, 1
  %v1503 = vsel %vm1405, %v1501, %v1502
  %v1504 = vrot.slane %v1278, 1
  %v1505 = vsel %vm1405, %v1502, %v1504
  %v1506 = vrot.slane %v1279, 1
  %v1507 = vrot.slane %v1280, 1
  %v1508 = vsel %vm1405, %v1506, %v1507
  %v1509 = vrot.slane %v1281, 1
  %v1510 = vsel %vm1405, %v1507, %v1509
  %v1511 = vrot.slane %v1282, 1
  %v1512 = vrot.slane %v1283, 1
  %v1513 = vsel %vm1405, %v1511, %v1512
  %v1514 = vrot.slane %v1284, 1
  %v1515 = vsel %vm1405, %v1512, %v1514
  %v1516 = vrot.slane %v1285, 1
  %v1517 = vrot.slane %v1286, 1
  %v1518 = vsel %vm1405, %v1516, %v1517
  %v1519 = vrot.slane %v1287, 1
  %v1520 = vsel %vm1405, %v1517, %v1519
  %v1521 = vrot.slane %v1288, 1
  %v1522 = vrot.slane %v1289, 1
  %v1523 = vsel %vm1405, %v1521, %v1522
  %v1524 = vrot.slane %v1290, 1
  %v1525 = vsel %vm1405, %v1522, %v1524
  %v1526 = vrot.slane %v1291, 1
  %v1527 = vrot.slane %v1292, 1
  %v1528 = vsel %vm1405, %v1526, %v1527
  %v1529 = vrot.slane %v1293, 1
  %v1530 = vsel %vm1405, %v1527, %v1529
  %v1531 = vrot.slane %v1294, 1
  %v1532 = vrot.slane %v1295, 1
  %v1533 = vsel %vm1405, %v1531, %v1532
  %v1534 = vrot.slane %v1296, 1
  %v1535 = vsel %vm1405, %v1532, %v1534
  %v1536 = vrot.slane %v1297, 1
  %v1537 = vrot.slane %v1298, 1
  %v1538 = vsel %vm1405, %v1536, %v1537
  %v1539 = vrot.slane %v1299, 1
  %v1540 = vsel %vm1405, %v1537, %v1539
  %v1541 = vrot.slane %v1300, 1
  %v1542 = vrot.slane %v1301, 1
  %v1543 = vsel %vm1405, %v1541, %v1542
  %v1544 = vrot.slane %v1302, 1
  %v1545 = vsel %vm1405, %v1542, %v1544
  %v1546 = vrot.slane %v1303, 1
  %v1547 = vrot.slane %v1304, 1
  %v1548 = vsel %vm1405, %v1546, %v1547
  %v1549 = vrot.slane %v1305, 1
  %v1550 = vsel %vm1405, %v1547, %v1549
  %v1551 = vrot.slane %v1306, 1
  %v1552 = vrot.slane %v1307, 1
  %v1553 = vsel %vm1405, %v1551, %v1552
  %v1554 = vrot.slane %v1308, 1
  %v1555 = vsel %vm1405, %v1552, %v1554
  %v1556 = vrot.slane %v1309, 1
  %v1557 = vrot.slane %v1310, 1
  %v1558 = vsel %vm1405, %v1556, %v1557
  %v1559 = vrot.slane %v1311, 1
  %v1560 = vsel %vm1405, %v1557, %v1559
  %v1654 = vadd.f32 %v1119, %v1408
  %v1655 = vadd.f32 %v1120, %v1410
  %v1656 = vadd.f32 %v1121, %v1409
  %v1657 = vadd.f32 %v1122, %v1413
  %v1658 = vadd.f32 %v1123, %v1415
  %v1659 = vadd.f32 %v1124, %v1414
  %v1660 = vadd.f32 %v1125, %v1418
  %v1661 = vadd.f32 %v1126, %v1420
  %v1662 = vadd.f32 %v1127, %v1419
  %v1663 = vadd.f32 %v1128, %v1423
  %v1664 = vadd.f32 %v1129, %v1425
  %v1665 = vadd.f32 %v1130, %v1424
  %v1666 = vadd.f32 %v1131, %v1428
  %v1667 = vadd.f32 %v1132, %v1430
  %v1668 = vadd.f32 %v1133, %v1429
  %v1669 = vadd.f32 %v1134, %v1433
  %v1670 = vadd.f32 %v1135, %v1435
  %v1671 = vadd.f32 %v1136, %v1434
  %v1672 = vadd.f32 %v1137, %v1438
  %v1673 = vadd.f32 %v1138, %v1440
  %v1674 = vadd.f32 %v1139, %v1439
  %v1675 = vadd.f32 %v1140, %v1443
  %v1676 = vadd.f32 %v1141, %v1445
  %v1677 = vadd.f32 %v1142, %v1444
  %v1678 = vadd.f32 %v1143, %v1448
  %v1679 = vadd.f32 %v1144, %v1450
  %v1680 = vadd.f32 %v1145, %v1449
  %v1681 = vadd.f32 %v1146, %v1453
  %v1682 = vadd.f32 %v1147, %v1455
  %v1683 = vadd.f32 %v1148, %v1454
  %v1684 = vadd.f32 %v1149, %v1458
  %v1685 = vadd.f32 %v1150, %v1460
  %v1686 = vadd.f32 %v1151, %v1459
  %v1687 = vadd.f32 %v1152, %v1463
  %v1688 = vadd.f32 %v1153, %v1465
  %v1689 = vadd.f32 %v1154, %v1464
  %v1690 = vadd.f32 %v1155, %v1468
  %v1691 = vadd.f32 %v1156, %v1470
  %v1692 = vadd.f32 %v1157, %v1469
  %v1693 = vadd.f32 %v1158, %v1473
  %v1694 = vadd.f32 %v1159, %v1475
  %v1695 = vadd.f32 %v1160, %v1474
  %v1696 = vadd.f32 %v1161, %v1478
  %v1697 = vadd.f32 %v1162, %v1480
  %v1698 = vadd.f32 %v1163, %v1479
  %v1699 = vadd.f32 %v1164, %v1483
  %v1700 = vadd.f32 %v1165, %v1485
  %v1701 = vadd.f32 %v1166, %v1484
  %v1702 = vadd.f32 %v1167, %v1408
  %v1703 = vadd.f32 %v1168, %v1410
  %v1704 = vadd.f32 %v1169, %v1409
  %v1705 = vadd.f32 %v1170, %v1488
  %v1706 = vadd.f32 %v1171, %v1490
  %v1707 = vadd.f32 %v1172, %v1489
  %v1708 = vadd.f32 %v1173, %v1493
  %v1709 = vadd.f32 %v1174, %v1495
  %v1710 = vadd.f32 %v1175, %v1494
  %v1711 = vadd.f32 %v1176, %v1498
  %v1712 = vadd.f32 %v1177, %v1500
  %v1713 = vadd.f32 %v1178, %v1499
  %v1714 = vadd.f32 %v1179, %v1503
  %v1715 = vadd.f32 %v1180, %v1505
  %v1716 = vadd.f32 %v1181, %v1504
  %v1717 = vadd.f32 %v1182, %v1508
  %v1718 = vadd.f32 %v1183, %v1510
  %v1719 = vadd.f32 %v1184, %v1509
  %v1720 = vadd.f32 %v1185, %v1513
  %v1721 = vadd.f32 %v1186, %v1515
  %v1722 = vadd.f32 %v1187, %v1514
  %v1723 = vadd.f32 %v1188, %v1518
  %v1724 = vadd.f32 %v1189, %v1520
  %v1725 = vadd.f32 %v1190, %v1519
  %v1726 = vadd.f32 %v1191, %v1523
  %v1727 = vadd.f32 %v1192, %v1525
  %v1728 = vadd.f32 %v1193, %v1524
  %v1729 = vadd.f32 %v1194, %v1528
  %v1730 = vadd.f32 %v1195, %v1530
  %v1731 = vadd.f32 %v1196, %v1529
  %v1732 = vadd.f32 %v1197, %v1533
  %v1733 = vadd.f32 %v1198, %v1535
  %v1734 = vadd.f32 %v1199, %v1534
  %v1735 = vadd.f32 %v1200, %v1538
  %v1736 = vadd.f32 %v1201, %v1540
  %v1737 = vadd.f32 %v1202, %v1539
  %v1738 = vadd.f32 %v1203, %v1543
  %v1739 = vadd.f32 %v1204, %v1545
  %v1740 = vadd.f32 %v1205, %v1544
  %v1741 = vadd.f32 %v1206, %v1548
  %v1742 = vadd.f32 %v1207, %v1550
  %v1743 = vadd.f32 %v1208, %v1549
  %v1744 = vadd.f32 %v1209, %v1553
  %v1745 = vadd.f32 %v1210, %v1555
  %v1746 = vadd.f32 %v1211, %v1554
  %v1747 = vadd.f32 %v1212, %v1558
  %v1748 = vadd.f32 %v1213, %v1560
  %v1749 = vadd.f32 %v1214, %v1559
  %v1750 = vlaneseq
  %v1751 = vshrl.u32 %v1750, 7
  %v1752 = vsub.s32 0, %v1751
  %v1753 = vrot.slane %v407, %v1752
  %v1754 = vmul.f32 %v341, %v1753
  %v1755 = vmul.f32 %v148, %v1753
  %v1756 = vmul.f32 %v342, %v1753
  %v1757 = vmul.f32 %v151, %v1753
  %v1758 = vmul.f32 %v343, %v1753
  %v1759 = vmul.f32 %v154, %v1753
  %v1760 = vmul.f32 %v344, %v1753
  %v1761 = vmul.f32 %v157, %v1753
  %v1762 = vmul.f32 %v345, %v1753
  %v1763 = vmul.f32 %v160, %v1753
  %v1764 = vmul.f32 %v346, %v1753
  %v1765 = vmul.f32 %v163, %v1753
  %v1766 = vmul.f32 %v347, %v1753
  %v1767 = vmul.f32 %v166, %v1753
  %v1768 = vmul.f32 %v348, %v1753
  %v1769 = vmul.f32 %v169, %v1753
  %v1770 = vmul.f32 %v349, %v1753
  %v1771 = vmul.f32 %v172, %v1753
  %v1772 = vmul.f32 %v350, %v1753
  %v1773 = vmul.f32 %v175, %v1753
  %v1774 = vmul.f32 %v351, %v1753
  %v1775 = vmul.f32 %v178, %v1753
  %v1776 = vmul.f32 %v352, %v1753
  %v1777 = vmul.f32 %v181, %v1753
  %v1778 = vmul.f32 %v353, %v1753
  %v1779 = vmul.f32 %v184, %v1753
  %v1780 = vmul.f32 %v354, %v1753
  %v1781 = vmul.f32 %v187, %v1753
  %v1782 = vmul.f32 %v355, %v1753
  %v1783 = vmul.f32 %v190, %v1753
  %v1784 = vmul.f32 %v356, %v1753
  %v1785 = vmul.f32 %v193, %v1753
  %v1786 = vmul.f32 %v357, %v1753
  %v1787 = vmul.f32 %v196, %v1753
  %v1788 = vmul.f32 %v358, %v1753
  %v1789 = vmul.f32 %v199, %v1753
  %v1790 = vmul.f32 %v359, %v1753
  %v1791 = vmul.f32 %v202, %v1753
  %v1792 = vmul.f32 %v360, %v1753
  %v1793 = vmul.f32 %v205, %v1753
  %v1794 = vmul.f32 %v361, %v1753
  %v1795 = vmul.f32 %v208, %v1753
  %v1796 = vmul.f32 %v362, %v1753
  %v1797 = vmul.f32 %v211, %v1753
  %v1798 = vmul.f32 %v363, %v1753
  %v1799 = vmul.f32 %v214, %v1753
  %v1800 = vmul.f32 %v364, %v1753
  %v1801 = vmul.f32 %v217, %v1753
  %v1802 = vmul.f32 %v365, %v1753
  %v1803 = vmul.f32 %v220, %v1753
  %v1804 = vmul.f32 %v366, %v1753
  %v1805 = vmul.f32 %v223, %v1753
  %v1806 = vmul.f32 %v367, %v1753
  %v1807 = vmul.f32 %v226, %v1753
  %v1808 = vmul.f32 %v368, %v1753
  %v1809 = vmul.f32 %v229, %v1753
  %v1810 = vmul.f32 %v369, %v1753
  %v1811 = vmul.f32 %v232, %v1753
  %v1812 = vmul.f32 %v370, %v1753
  %v1813 = vmul.f32 %v235, %v1753
  %v1814 = vmul.f32 %v371, %v1753
  %v1815 = vmul.f32 %v238, %v1753
  %v1816 = vmul.f32 %v372, %v1753
  %v1817 = vmul.f32 %v241, %v1753
  %v1882 = vrot.slane %v1754, 7
  %v1883 = vrot.slane %v1755, 7
  %v1884 = vsel %vm143, %v1882, %v1883
  %v1885 = vrot.slane %v1756, 7
  %v1886 = vrot.slane %v1757, 7
  %v1887 = vsel %vm143, %v1885, %v1886
  %v1888 = vrot.slane %v1758, 7
  %v1889 = vrot.slane %v1759, 7
  %v1890 = vsel %vm143, %v1888, %v1889
  %v1891 = vrot.slane %v1760, 7
  %v1892 = vrot.slane %v1761, 7
  %v1893 = vsel %vm143, %v1891, %v1892
  %v1894 = vrot.slane %v1762, 7
  %v1895 = vrot.slane %v1763, 7
  %v1896 = vsel %vm143, %v1894, %v1895
  %v1897 = vrot.slane %v1764, 7
  %v1898 = vrot.slane %v1765, 7
  %v1899 = vsel %vm143, %v1897, %v1898
  %v1900 = vrot.slane %v1766, 7
  %v1901 = vrot.slane %v1767, 7
  %v1902 = vsel %vm143, %v1900, %v1901
  %v1903 = vrot.slane %v1768, 7
  %v1904 = vrot.slane %v1769, 7
  %v1905 = vsel %vm143, %v1903, %v1904
  %v1906 = vrot.slane %v1770, 7
  %v1907 = vrot.slane %v1771, 7
  %v1908 = vsel %vm143, %v1906, %v1907
  %v1909 = vrot.slane %v1772, 7
  %v1910 = vrot.slane %v1773, 7
  %v1911 = vsel %vm143, %v1909, %v1910
  %v1912 = vrot.slane %v1774, 7
  %v1913 = vrot.slane %v1775, 7
  %v1914 = vsel %vm143, %v1912, %v1913
  %v1915 = vrot.slane %v1776, 7
  %v1916 = vrot.slane %v1777, 7
  %v1917 = vsel %vm143, %v1915, %v1916
  %v1918 = vrot.slane %v1778, 7
  %v1919 = vrot.slane %v1779, 7
  %v1920 = vsel %vm143, %v1918, %v1919
  %v1921 = vrot.slane %v1780, 7
  %v1922 = vrot.slane %v1781, 7
  %v1923 = vsel %vm143, %v1921, %v1922
  %v1924 = vrot.slane %v1782, 7
  %v1925 = vrot.slane %v1783, 7
  %v1926 = vsel %vm143, %v1924, %v1925
  %v1927 = vrot.slane %v1784, 7
  %v1928 = vrot.slane %v1785, 7
  %v1929 = vsel %vm143, %v1927, %v1928
  %v1930 = vrot.slane %v1786, 7
  %v1931 = vrot.slane %v1787, 7
  %v1932 = vsel %vm143, %v1930, %v1931
  %v1933 = vrot.slane %v1788, 7
  %v1934 = vrot.slane %v1789, 7
  %v1935 = vsel %vm143, %v1933, %v1934
  %v1936 = vrot.slane %v1790, 7
  %v1937 = vrot.slane %v1791, 7
  %v1938 = vsel %vm143, %v1936, %v1937
  %v1939 = vrot.slane %v1792, 7
  %v1940 = vrot.slane %v1793, 7
  %v1941 = vsel %vm143, %v1939, %v1940
  %v1942 = vrot.slane %v1794, 7
  %v1943 = vrot.slane %v1795, 7
  %v1944 = vsel %vm143, %v1942, %v1943
  %v1945 = vrot.slane %v1796, 7
  %v1946 = vrot.slane %v1797, 7
  %v1947 = vsel %vm143, %v1945, %v1946
  %v1948 = vrot.slane %v1798, 7
  %v1949 = vrot.slane %v1799, 7
  %v1950 = vsel %vm143, %v1948, %v1949
  %v1951 = vrot.slane %v1800, 7
  %v1952 = vrot.slane %v1801, 7
  %v1953 = vsel %vm143, %v1951, %v1952
  %v1954 = vrot.slane %v1802, 7
  %v1955 = vrot.slane %v1803, 7
  %v1956 = vsel %vm143, %v1954, %v1955
  %v1957 = vrot.slane %v1804, 7
  %v1958 = vrot.slane %v1805, 7
  %v1959 = vsel %vm143, %v1957, %v1958
  %v1960 = vrot.slane %v1806, 7
  %v1961 = vrot.slane %v1807, 7
  %v1962 = vsel %vm143, %v1960, %v1961
  %v1963 = vrot.slane %v1808, 7
  %v1964 = vrot.slane %v1809, 7
  %v1965 = vsel %vm143, %v1963, %v1964
  %v1966 = vrot.slane %v1810, 7
  %v1967 = vrot.slane %v1811, 7
  %v1968 = vsel %vm143, %v1966, %v1967
  %v1969 = vrot.slane %v1812, 7
  %v1970 = vrot.slane %v1813, 7
  %v1971 = vsel %vm143, %v1969, %v1970
  %v1972 = vrot.slane %v1814, 7
  %v1973 = vrot.slane %v1815, 7
  %v1974 = vsel %vm143, %v1972, %v1973
  %v1975 = vrot.slane %v1816, 7
  %v1976 = vrot.slane %v1817, 7
  %v1977 = vsel %vm143, %v1975, %v1976
  %v2074 = vadd.f32 %v1654, %v1882
  %v2075 = vadd.f32 %v1655, %v1884
  %v2076 = vadd.f32 %v1656, %v1883
  %v2077 = vadd.f32 %v1657, %v1885
  %v2078 = vadd.f32 %v1658, %v1887
  %v2079 = vadd.f32 %v1659, %v1886
  %v2080 = vadd.f32 %v1660, %v1888
  %v2081 = vadd.f32 %v1661, %v1890
  %v2082 = vadd.f32 %v1662, %v1889
  %v2083 = vadd.f32 %v1663, %v1891
  %v2084 = vadd.f32 %v1664, %v1893
  %v2085 = vadd.f32 %v1665, %v1892
  %v2086 = vadd.f32 %v1666, %v1894
  %v2087 = vadd.f32 %v1667, %v1896
  %v2088 = vadd.f32 %v1668, %v1895
  %v2089 = vadd.f32 %v1669, %v1897
  %v2090 = vadd.f32 %v1670, %v1899
  %v2091 = vadd.f32 %v1671, %v1898
  %v2092 = vadd.f32 %v1672, %v1900
  %v2093 = vadd.f32 %v1673, %v1902
  %v2094 = vadd.f32 %v1674, %v1901
  %v2095 = vadd.f32 %v1675, %v1903
  %v2096 = vadd.f32 %v1676, %v1905
  %v2097 = vadd.f32 %v1677, %v1904
  %v2098 = vadd.f32 %v1678, %v1906
  %v2099 = vadd.f32 %v1679, %v1908
  %v2100 = vadd.f32 %v1680, %v1907
  %v2101 = vadd.f32 %v1681, %v1909
  %v2102 = vadd.f32 %v1682, %v1911
  %v2103 = vadd.f32 %v1683, %v1910
  %v2104 = vadd.f32 %v1684, %v1912
  %v2105 = vadd.f32 %v1685, %v1914
  %v2106 = vadd.f32 %v1686, %v1913
  %v2107 = vadd.f32 %v1687, %v1915
  %v2108 = vadd.f32 %v1688, %v1917
  %v2109 = vadd.f32 %v1689, %v1916
  %v2110 = vadd.f32 %v1690, %v1918
  %v2111 = vadd.f32 %v1691, %v1920
  %v2112 = vadd.f32 %v1692, %v1919
  %v2113 = vadd.f32 %v1693, %v1921
  %v2114 = vadd.f32 %v1694, %v1923
  %v2115 = vadd.f32 %v1695, %v1922
  %v2116 = vadd.f32 %v1696, %v1924
  %v2117 = vadd.f32 %v1697, %v1926
  %v2118 = vadd.f32 %v1698, %v1925
  %v2119 = vadd.f32 %v1699, %v1927
  %v2120 = vadd.f32 %v1700, %v1929
  %v2121 = vadd.f32 %v1701, %v1928
  %v2122 = vadd.f32 %v1702, %v1930
  %v2123 = vadd.f32 %v1703, %v1932
  %v2124 = vadd.f32 %v1704, %v1931
  %v2125 = vadd.f32 %v1705, %v1933
  %v2126 = vadd.f32 %v1706, %v1935
  %v2127 = vadd.f32 %v1707, %v1934
  %v2128 = vadd.f32 %v1708, %v1936
  %v2129 = vadd.f32 %v1709, %v1938
  %v2130 = vadd.f32 %v1710, %v1937
  %v2131 = vadd.f32 %v1711, %v1939
  %v2132 = vadd.f32 %v1712, %v1941
  %v2133 = vadd.f32 %v1713, %v1940
  %v2134 = vadd.f32 %v1714, %v1942
  %v2135 = vadd.f32 %v1715, %v1944
  %v2136 = vadd.f32 %v1716, %v1943
  %v2137 = vadd.f32 %v1717, %v1945
  %v2138 = vadd.f32 %v1718, %v1947
  %v2139 = vadd.f32 %v1719, %v1946
  %v2140 = vadd.f32 %v1720, %v1948
  %v2141 = vadd.f32 %v1721, %v1950
  %v2142 = vadd.f32 %v1722, %v1949
  %v2143 = vadd.f32 %v1723, %v1951
  %v2144 = vadd.f32 %v1724, %v1953
  %v2145 = vadd.f32 %v1725, %v1952
  %v2146 = vadd.f32 %v1726, %v1954
  %v2147 = vadd.f32 %v1727, %v1956
  %v2148 = vadd.f32 %v1728, %v1955
  %v2149 = vadd.f32 %v1729, %v1957
  %v2150 = vadd.f32 %v1730, %v1959
  %v2151 = vadd.f32 %v1731, %v1958
  %v2152 = vadd.f32 %v1732, %v1960
  %v2153 = vadd.f32 %v1733, %v1962
  %v2154 = vadd.f32 %v1734, %v1961
  %v2155 = vadd.f32 %v1735, %v1963
  %v2156 = vadd.f32 %v1736, %v1965
  %v2157 = vadd.f32 %v1737, %v1964
  %v2158 = vadd.f32 %v1738, %v1966
  %v2159 = vadd.f32 %v1739, %v1968
  %v2160 = vadd.f32 %v1740, %v1967
  %v2161 = vadd.f32 %v1741, %v1969
  %v2162 = vadd.f32 %v1742, %v1971
  %v2163 = vadd.f32 %v1743, %v1970
  %v2164 = vadd.f32 %v1744, %v1972
  %v2165 = vadd.f32 %v1745, %v1974
  %v2166 = vadd.f32 %v1746, %v1973
  %v2167 = vadd.f32 %v1747, %v1975
  %v2168 = vadd.f32 %v1748, %v1977
  %v2169 = vadd.f32 %v1749, %v1976
  %v2170 = vlaneseq
  %v2171 = vshrl.u32 %v2170, 7
  %v2172 = vsub.s32 2, %v2171
  %v2173 = vrot.slane %v407, %v2172
  %v2174 = vmul.f32 %v341, %v2173
  %v2175 = vmul.f32 %v148, %v2173
  %v2176 = vmul.f32 %v374, %v2173
  %v2177 = vmul.f32 %v342, %v2173
  %v2178 = vmul.f32 %v151, %v2173
  %v2179 = vmul.f32 %v375, %v2173
  %v2180 = vmul.f32 %v343, %v2173
  %v2181 = vmul.f32 %v154, %v2173
  %v2182 = vmul.f32 %v376, %v2173
  %v2183 = vmul.f32 %v344, %v2173
  %v2184 = vmul.f32 %v157, %v2173
  %v2185 = vmul.f32 %v377, %v2173
  %v2186 = vmul.f32 %v345, %v2173
  %v2187 = vmul.f32 %v160, %v2173
  %v2188 = vmul.f32 %v378, %v2173
  %v2189 = vmul.f32 %v346, %v2173
  %v2190 = vmul.f32 %v163, %v2173
  %v2191 = vmul.f32 %v379, %v2173
  %v2192 = vmul.f32 %v347, %v2173
  %v2193 = vmul.f32 %v166, %v2173
  %v2194 = vmul.f32 %v380, %v2173
  %v2195 = vmul.f32 %v348, %v2173
  %v2196 = vmul.f32 %v169, %v2173
  %v2197 = vmul.f32 %v381, %v2173
  %v2198 = vmul.f32 %v349, %v2173
  %v2199 = vmul.f32 %v172, %v2173
  %v2200 = vmul.f32 %v382, %v2173
  %v2201 = vmul.f32 %v350, %v2173
  %v2202 = vmul.f32 %v175, %v2173
  %v2203 = vmul.f32 %v383, %v2173
  %v2204 = vmul.f32 %v351, %v2173
  %v2205 = vmul.f32 %v178, %v2173
  %v2206 = vmul.f32 %v384, %v2173
  %v2207 = vmul.f32 %v352, %v2173
  %v2208 = vmul.f32 %v181, %v2173
  %v2209 = vmul.f32 %v385, %v2173
  %v2210 = vmul.f32 %v353, %v2173
  %v2211 = vmul.f32 %v184, %v2173
  %v2212 = vmul.f32 %v386, %v2173
  %v2213 = vmul.f32 %v354, %v2173
  %v2214 = vmul.f32 %v187, %v2173
  %v2215 = vmul.f32 %v387, %v2173
  %v2216 = vmul.f32 %v355, %v2173
  %v2217 = vmul.f32 %v190, %v2173
  %v2218 = vmul.f32 %v388, %v2173
  %v2219 = vmul.f32 %v356, %v2173
  %v2220 = vmul.f32 %v193, %v2173
  %v2221 = vmul.f32 %v389, %v2173
  %v2222 = vmul.f32 %v357, %v2173
  %v2223 = vmul.f32 %v196, %v2173
  %v2224 = vmul.f32 %v390, %v2173
  %v2225 = vmul.f32 %v358, %v2173
  %v2226 = vmul.f32 %v199, %v2173
  %v2227 = vmul.f32 %v391, %v2173
  %v2228 = vmul.f32 %v359, %v2173
  %v2229 = vmul.f32 %v202, %v2173
  %v2230 = vmul.f32 %v392, %v2173
  %v2231 = vmul.f32 %v360, %v2173
  %v2232 = vmul.f32 %v205, %v2173
  %v2233 = vmul.f32 %v393, %v2173
  %v2234 = vmul.f32 %v361, %v2173
  %v2235 = vmul.f32 %v208, %v2173
  %v2236 = vmul.f32 %v394, %v2173
  %v2237 = vmul.f32 %v362, %v2173
  %v2238 = vmul.f32 %v211, %v2173
  %v2239 = vmul.f32 %v395, %v2173
  %v2240 = vmul.f32 %v363, %v2173
  %v2241 = vmul.f32 %v214, %v2173
  %v2242 = vmul.f32 %v396, %v2173
  %v2243 = vmul.f32 %v364, %v2173
  %v2244 = vmul.f32 %v217, %v2173
  %v2245 = vmul.f32 %v397, %v2173
  %v2246 = vmul.f32 %v365, %v2173
  %v2247 = vmul.f32 %v220, %v2173
  %v2248 = vmul.f32 %v398, %v2173
  %v2249 = vmul.f32 %v366, %v2173
  %v2250 = vmul.f32 %v223, %v2173
  %v2251 = vmul.f32 %v399, %v2173
  %v2252 = vmul.f32 %v367, %v2173
  %v2253 = vmul.f32 %v226, %v2173
  %v2254 = vmul.f32 %v400, %v2173
  %v2255 = vmul.f32 %v368, %v2173
  %v2256 = vmul.f32 %v229, %v2173
  %v2257 = vmul.f32 %v401, %v2173
  %v2258 = vmul.f32 %v369, %v2173
  %v2259 = vmul.f32 %v232, %v2173
  %v2260 = vmul.f32 %v402, %v2173
  %v2261 = vmul.f32 %v370, %v2173
  %v2262 = vmul.f32 %v235, %v2173
  %v2263 = vmul.f32 %v403, %v2173
  %v2264 = vmul.f32 %v371, %v2173
  %v2265 = vmul.f32 %v238, %v2173
  %v2266 = vmul.f32 %v404, %v2173
  %v2267 = vmul.f32 %v372, %v2173
  %v2268 = vmul.f32 %v241, %v2173
  %v2269 = vmul.f32 %v405, %v2173
  %v2366 = vrot.slane %v2174, 1
  %v2367 = vrot.slane %v2175, 1
  %v2368 = vsel %vm1405, %v2366, %v2367
  %v2369 = vrot.slane %v2176, 1
  %v2370 = vsel %vm1405, %v2367, %v2369
  %v2371 = vrot.slane %v2177, 1
  %v2372 = vrot.slane %v2178, 1
  %v2373 = vsel %vm1405, %v2371, %v2372
  %v2374 = vrot.slane %v2179, 1
  %v2375 = vsel %vm1405, %v2372, %v2374
  %v2376 = vrot.slane %v2180, 1
  %v2377 = vrot.slane %v2181, 1
  %v2378 = vsel %vm1405, %v2376, %v2377
  %v2379 = vrot.slane %v2182, 1
  %v2380 = vsel %vm1405, %v2377, %v2379
  %v2381 = vrot.slane %v2183, 1
  %v2382 = vrot.slane %v2184, 1
  %v2383 = vsel %vm1405, %v2381, %v2382
  %v2384 = vrot.slane %v2185, 1
  %v2385 = vsel %vm1405, %v2382, %v2384
  %v2386 = vrot.slane %v2186, 1
  %v2387 = vrot.slane %v2187, 1
  %v2388 = vsel %vm1405, %v2386, %v2387
  %v2389 = vrot.slane %v2188, 1
  %v2390 = vsel %vm1405, %v2387, %v2389
  %v2391 = vrot.slane %v2189, 1
  %v2392 = vrot.slane %v2190, 1
  %v2393 = vsel %vm1405, %v2391, %v2392
  %v2394 = vrot.slane %v2191, 1
  %v2395 = vsel %vm1405, %v2392, %v2394
  %v2396 = vrot.slane %v2192, 1
  %v2397 = vrot.slane %v2193, 1
  %v2398 = vsel %vm1405, %v2396, %v2397
  %v2399 = vrot.slane %v2194, 1
  %v2400 = vsel %vm1405, %v2397, %v2399
  %v2401 = vrot.slane %v2195, 1
  %v2402 = vrot.slane %v2196, 1
  %v2403 = vsel %vm1405, %v2401, %v2402
  %v2404 = vrot.slane %v2197, 1
  %v2405 = vsel %vm1405, %v2402, %v2404
  %v2406 = vrot.slane %v2198, 1
  %v2407 = vrot.slane %v2199, 1
  %v2408 = vsel %vm1405, %v2406, %v2407
  %v2409 = vrot.slane %v2200, 1
  %v2410 = vsel %vm1405, %v2407, %v2409
  %v2411 = vrot.slane %v2201, 1
  %v2412 = vrot.slane %v2202, 1
  %v2413 = vsel %vm1405, %v2411, %v2412
  %v2414 = vrot.slane %v2203, 1
  %v2415 = vsel %vm1405, %v2412, %v2414
  %v2416 = vrot.slane %v2204, 1
  %v2417 = vrot.slane %v2205, 1
  %v2418 = vsel %vm1405, %v2416, %v2417
  %v2419 = vrot.slane %v2206, 1
  %v2420 = vsel %vm1405, %v2417, %v2419
  %v2421 = vrot.slane %v2207, 1
  %v2422 = vrot.slane %v2208, 1
  %v2423 = vsel %vm1405, %v2421, %v2422
  %v2424 = vrot.slane %v2209, 1
  %v2425 = vsel %vm1405, %v2422, %v2424
  %v2426 = vrot.slane %v2210, 1
  %v2427 = vrot.slane %v2211, 1
  %v2428 = vsel %vm1405, %v2426, %v2427
  %v2429 = vrot.slane %v2212, 1
  %v2430 = vsel %vm1405, %v2427, %v2429
  %v2431 = vrot.slane %v2213, 1
  %v2432 = vrot.slane %v2214, 1
  %v2433 = vsel %vm1405, %v2431, %v2432
  %v2434 = vrot.slane %v2215, 1
  %v2435 = vsel %vm1405, %v2432, %v2434
  %v2436 = vrot.slane %v2216, 1
  %v2437 = vrot.slane %v2217, 1
  %v2438 = vsel %vm1405, %v2436, %v2437
  %v2439 = vrot.slane %v2218, 1
  %v2440 = vsel %vm1405, %v2437, %v2439
  %v2441 = vrot.slane %v2219, 1
  %v2442 = vrot.slane %v2220, 1
  %v2443 = vsel %vm1405, %v2441, %v2442
  %v2444 = vrot.slane %v2221, 1
  %v2445 = vsel %vm1405, %v2442, %v2444
  %v2446 = vrot.slane %v2222, 1
  %v2447 = vrot.slane %v2223, 1
  %v2448 = vsel %vm1405, %v2446, %v2447
  %v2449 = vrot.slane %v2224, 1
  %v2450 = vsel %vm1405, %v2447, %v2449
  %v2451 = vrot.slane %v2225, 1
  %v2452 = vrot.slane %v2226, 1
  %v2453 = vsel %vm1405, %v2451, %v2452
  %v2454 = vrot.slane %v2227, 1
  %v2455 = vsel %vm1405, %v2452, %v2454
  %v2456 = vrot.slane %v2228, 1
  %v2457 = vrot.slane %v2229, 1
  %v2458 = vsel %vm1405, %v2456, %v2457
  %v2459 = vrot.slane %v2230, 1
  %v2460 = vsel %vm1405, %v2457, %v2459
  %v2461 = vrot.slane %v2231, 1
  %v2462 = vrot.slane %v2232, 1
  %v2463 = vsel %vm1405, %v2461, %v2462
  %v2464 = vrot.slane %v2233, 1
  %v2465 = vsel %vm1405, %v2462, %v2464
  %v2466 = vrot.slane %v2234, 1
  %v2467 = vrot.slane %v2235, 1
  %v2468 = vsel %vm1405, %v2466, %v2467
  %v2469 = vrot.slane %v2236, 1
  %v2470 = vsel %vm1405, %v2467, %v2469
  %v2471 = vrot.slane %v2237, 1
  %v2472 = vrot.slane %v2238, 1
  %v2473 = vsel %vm1405, %v2471, %v2472
  %v2474 = vrot.slane %v2239, 1
  %v2475 = vsel %vm1405, %v2472, %v2474
  %v2476 = vrot.slane %v2240, 1
  %v2477 = vrot.slane %v2241, 1
  %v2478 = vsel %vm1405, %v2476, %v2477
  %v2479 = vrot.slane %v2242, 1
  %v2480 = vsel %vm1405, %v2477, %v2479
  %v2481 = vrot.slane %v2243, 1
  %v2482 = vrot.slane %v2244, 1
  %v2483 = vsel %vm1405, %v2481, %v2482
  %v2484 = vrot.slane %v2245, 1
  %v2485 = vsel %vm1405, %v2482, %v2484
  %v2486 = vrot.slane %v2246, 1
  %v2487 = vrot.slane %v2247, 1
  %v2488 = vsel %vm1405, %v2486, %v2487
  %v2489 = vrot.slane %v2248, 1
  %v2490 = vsel %vm1405, %v2487, %v2489
  %v2491 = vrot.slane %v2249, 1
  %v2492 = vrot.slane %v2250, 1
  %v2493 = vsel %vm1405, %v2491, %v2492
  %v2494 = vrot.slane %v2251, 1
  %v2495 = vsel %vm1405, %v2492, %v2494
  %v2496 = vrot.slane %v2252, 1
  %v2497 = vrot.slane %v2253, 1
  %v2498 = vsel %vm1405, %v2496, %v2497
  %v2499 = vrot.slane %v2254, 1
  %v2500 = vsel %vm1405, %v2497, %v2499
  %v2501 = vrot.slane %v2255, 1
  %v2502 = vrot.slane %v2256, 1
  %v2503 = vsel %vm1405, %v2501, %v2502
  %v2504 = vrot.slane %v2257, 1
  %v2505 = vsel %vm1405, %v2502, %v2504
  %v2506 = vrot.slane %v2258, 1
  %v2507 = vrot.slane %v2259, 1
  %v2508 = vsel %vm1405, %v2506, %v2507
  %v2509 = vrot.slane %v2260, 1
  %v2510 = vsel %vm1405, %v2507, %v2509
  %v2511 = vrot.slane %v2261, 1
  %v2512 = vrot.slane %v2262, 1
  %v2513 = vsel %vm1405, %v2511, %v2512
  %v2514 = vrot.slane %v2263, 1
  %v2515 = vsel %vm1405, %v2512, %v2514
  %v2516 = vrot.slane %v2264, 1
  %v2517 = vrot.slane %v2265, 1
  %v2518 = vsel %vm1405, %v2516, %v2517
  %v2519 = vrot.slane %v2266, 1
  %v2520 = vsel %vm1405, %v2517, %v2519
  %v2521 = vrot.slane %v2267, 1
  %v2522 = vrot.slane %v2268, 1
  %v2523 = vsel %vm1405, %v2521, %v2522
  %v2524 = vrot.slane %v2269, 1
  %v2525 = vsel %vm1405, %v2522, %v2524
  %v2622 = vadd.f32 %v2074, %v2368
  %v2623 = vadd.f32 %v2075, %v2370
  %v2624 = vadd.f32 %v2076, %v2369
  %v2625 = vadd.f32 %v2077, %v2373
  %v2626 = vadd.f32 %v2078, %v2375
  %v2627 = vadd.f32 %v2079, %v2374
  %v2628 = vadd.f32 %v2080, %v2378
  %v2629 = vadd.f32 %v2081, %v2380
  %v2630 = vadd.f32 %v2082, %v2379
  %v2631 = vadd.f32 %v2083, %v2383
  %v2632 = vadd.f32 %v2084, %v2385
  %v2633 = vadd.f32 %v2085, %v2384
  %v2634 = vadd.f32 %v2086, %v2388
  %v2635 = vadd.f32 %v2087, %v2390
  %v2636 = vadd.f32 %v2088, %v2389
  %v2637 = vadd.f32 %v2089, %v2393
  %v2638 = vadd.f32 %v2090, %v2395
  %v2639 = vadd.f32 %v2091, %v2394
  %v2640 = vadd.f32 %v2092, %v2398
  %v2641 = vadd.f32 %v2093, %v2400
  %v2642 = vadd.f32 %v2094, %v2399
  %v2643 = vadd.f32 %v2095, %v2403
  %v2644 = vadd.f32 %v2096, %v2405
  %v2645 = vadd.f32 %v2097, %v2404
  %v2646 = vadd.f32 %v2098, %v2408
  %v2647 = vadd.f32 %v2099, %v2410
  %v2648 = vadd.f32 %v2100, %v2409
  %v2649 = vadd.f32 %v2101, %v2413
  %v2650 = vadd.f32 %v2102, %v2415
  %v2651 = vadd.f32 %v2103, %v2414
  %v2652 = vadd.f32 %v2104, %v2418
  %v2653 = vadd.f32 %v2105, %v2420
  %v2654 = vadd.f32 %v2106, %v2419
  %v2655 = vadd.f32 %v2107, %v2423
  %v2656 = vadd.f32 %v2108, %v2425
  %v2657 = vadd.f32 %v2109, %v2424
  %v2658 = vadd.f32 %v2110, %v2428
  %v2659 = vadd.f32 %v2111, %v2430
  %v2660 = vadd.f32 %v2112, %v2429
  %v2661 = vadd.f32 %v2113, %v2433
  %v2662 = vadd.f32 %v2114, %v2435
  %v2663 = vadd.f32 %v2115, %v2434
  %v2664 = vadd.f32 %v2116, %v2438
  %v2665 = vadd.f32 %v2117, %v2440
  %v2666 = vadd.f32 %v2118, %v2439
  %v2667 = vadd.f32 %v2119, %v2443
  %v2668 = vadd.f32 %v2120, %v2445
  %v2669 = vadd.f32 %v2121, %v2444
  %v2670 = vadd.f32 %v2122, %v2448
  %v2671 = vadd.f32 %v2123, %v2450
  %v2672 = vadd.f32 %v2124, %v2449
  %v2673 = vadd.f32 %v2125, %v2453
  %v2674 = vadd.f32 %v2126, %v2455
  %v2675 = vadd.f32 %v2127, %v2454
  %v2676 = vadd.f32 %v2128, %v2458
  %v2677 = vadd.f32 %v2129, %v2460
  %v2678 = vadd.f32 %v2130, %v2459
  %v2679 = vadd.f32 %v2131, %v2463
  %v2680 = vadd.f32 %v2132, %v2465
  %v2681 = vadd.f32 %v2133, %v2464
  %v2682 = vadd.f32 %v2134, %v2468
  %v2683 = vadd.f32 %v2135, %v2470
  %v2684 = vadd.f32 %v2136, %v2469
  %v2685 = vadd.f32 %v2137, %v2473
  %v2686 = vadd.f32 %v2138, %v2475
  %v2687 = vadd.f32 %v2139, %v2474
  %v2688 = vadd.f32 %v2140, %v2478
  %v2689 = vadd.f32 %v2141, %v2480
  %v2690 = vadd.f32 %v2142, %v2479
  %v2691 = vadd.f32 %v2143, %v2483
  %v2692 = vadd.f32 %v2144, %v2485
  %v2693 = vadd.f32 %v2145, %v2484
  %v2694 = vadd.f32 %v2146, %v2488
  %v2695 = vadd.f32 %v2147, %v2490
  %v2696 = vadd.f32 %v2148, %v2489
  %v2697 = vadd.f32 %v2149, %v2493
  %v2698 = vadd.f32 %v2150, %v2495
  %v2699 = vadd.f32 %v2151, %v2494
  %v2700 = vadd.f32 %v2152, %v2498
  %v2701 = vadd.f32 %v2153, %v2500
  %v2702 = vadd.f32 %v2154, %v2499
  %v2703 = vadd.f32 %v2155, %v2503
  %v2704 = vadd.f32 %v2156, %v2505
  %v2705 = vadd.f32 %v2157, %v2504
  %v2706 = vadd.f32 %v2158, %v2508
  %v2707 = vadd.f32 %v2159, %v2510
  %v2708 = vadd.f32 %v2160, %v2509
  %v2709 = vadd.f32 %v2161, %v2513
  %v2710 = vadd.f32 %v2162, %v2515
  %v2711 = vadd.f32 %v2163, %v2514
  %v2712 = vadd.f32 %v2164, %v2518
  %v2713 = vadd.f32 %v2165, %v2520
  %v2714 = vadd.f32 %v2166, %v2519
  %v2715 = vadd.f32 %v2167, %v2523
  %v2716 = vadd.f32 %v2168, %v2525
  %v2717 = vadd.f32 %v2169, %v2524
  %v2718 = vlaneseq
  %v2719 = vshrl.u32 %v2718, 7
  %v2720 = vsub.s32 0, %v2719
  %v2721 = vrot.slane %v408, %v2720
  %v2722 = vmul.f32 %v342, %v2721
  %v2723 = vmul.f32 %v151, %v2721
  %v2724 = vmul.f32 %v343, %v2721
  %v2725 = vmul.f32 %v154, %v2721
  %v2726 = vmul.f32 %v344, %v2721
  %v2727 = vmul.f32 %v157, %v2721
  %v2728 = vmul.f32 %v345, %v2721
  %v2729 = vmul.f32 %v160, %v2721
  %v2730 = vmul.f32 %v346, %v2721
  %v2731 = vmul.f32 %v163, %v2721
  %v2732 = vmul.f32 %v347, %v2721
  %v2733 = vmul.f32 %v166, %v2721
  %v2734 = vmul.f32 %v348, %v2721
  %v2735 = vmul.f32 %v169, %v2721
  %v2736 = vmul.f32 %v349, %v2721
  %v2737 = vmul.f32 %v172, %v2721
  %v2738 = vmul.f32 %v350, %v2721
  %v2739 = vmul.f32 %v175, %v2721
  %v2740 = vmul.f32 %v351, %v2721
  %v2741 = vmul.f32 %v178, %v2721
  %v2742 = vmul.f32 %v352, %v2721
  %v2743 = vmul.f32 %v181, %v2721
  %v2744 = vmul.f32 %v353, %v2721
  %v2745 = vmul.f32 %v184, %v2721
  %v2746 = vmul.f32 %v354, %v2721
  %v2747 = vmul.f32 %v187, %v2721
  %v2748 = vmul.f32 %v355, %v2721
  %v2749 = vmul.f32 %v190, %v2721
  %v2750 = vmul.f32 %v356, %v2721
  %v2751 = vmul.f32 %v193, %v2721
  %v2752 = vmul.f32 %v340, %v2721
  %v2753 = vmul.f32 %v145, %v2721
  %v2754 = vmul.f32 %v358, %v2721
  %v2755 = vmul.f32 %v199, %v2721
  %v2756 = vmul.f32 %v359, %v2721
  %v2757 = vmul.f32 %v202, %v2721
  %v2758 = vmul.f32 %v360, %v2721
  %v2759 = vmul.f32 %v205, %v2721
  %v2760 = vmul.f32 %v361, %v2721
  %v2761 = vmul.f32 %v208, %v2721
  %v2762 = vmul.f32 %v362, %v2721
  %v2763 = vmul.f32 %v211, %v2721
  %v2764 = vmul.f32 %v363, %v2721
  %v2765 = vmul.f32 %v214, %v2721
  %v2766 = vmul.f32 %v364, %v2721
  %v2767 = vmul.f32 %v217, %v2721
  %v2768 = vmul.f32 %v365, %v2721
  %v2769 = vmul.f32 %v220, %v2721
  %v2770 = vmul.f32 %v366, %v2721
  %v2771 = vmul.f32 %v223, %v2721
  %v2772 = vmul.f32 %v367, %v2721
  %v2773 = vmul.f32 %v226, %v2721
  %v2774 = vmul.f32 %v368, %v2721
  %v2775 = vmul.f32 %v229, %v2721
  %v2776 = vmul.f32 %v369, %v2721
  %v2777 = vmul.f32 %v232, %v2721
  %v2778 = vmul.f32 %v370, %v2721
  %v2779 = vmul.f32 %v235, %v2721
  %v2780 = vmul.f32 %v371, %v2721
  %v2781 = vmul.f32 %v238, %v2721
  %v2782 = vmul.f32 %v372, %v2721
  %v2783 = vmul.f32 %v241, %v2721
  %v2846 = vrot.slane %v2722, 7
  %v2847 = vrot.slane %v2723, 7
  %v2848 = vsel %vm143, %v2846, %v2847
  %v2849 = vrot.slane %v2724, 7
  %v2850 = vrot.slane %v2725, 7
  %v2851 = vsel %vm143, %v2849, %v2850
  %v2852 = vrot.slane %v2726, 7
  %v2853 = vrot.slane %v2727, 7
  %v2854 = vsel %vm143, %v2852, %v2853
  %v2855 = vrot.slane %v2728, 7
  %v2856 = vrot.slane %v2729, 7
  %v2857 = vsel %vm143, %v2855, %v2856
  %v2858 = vrot.slane %v2730, 7
  %v2859 = vrot.slane %v2731, 7
  %v2860 = vsel %vm143, %v2858, %v2859
  %v2861 = vrot.slane %v2732, 7
  %v2862 = vrot.slane %v2733, 7
  %v2863 = vsel %vm143, %v2861, %v2862
  %v2864 = vrot.slane %v2734, 7
  %v2865 = vrot.slane %v2735, 7
  %v2866 = vsel %vm143, %v2864, %v2865
  %v2867 = vrot.slane %v2736, 7
  %v2868 = vrot.slane %v2737, 7
  %v2869 = vsel %vm143, %v2867, %v2868
  %v2870 = vrot.slane %v2738, 7
  %v2871 = vrot.slane %v2739, 7
  %v2872 = vsel %vm143, %v2870, %v2871
  %v2873 = vrot.slane %v2740, 7
  %v2874 = vrot.slane %v2741, 7
  %v2875 = vsel %vm143, %v2873, %v2874
  %v2876 = vrot.slane %v2742, 7
  %v2877 = vrot.slane %v2743, 7
  %v2878 = vsel %vm143, %v2876, %v2877
  %v2879 = vrot.slane %v2744, 7
  %v2880 = vrot.slane %v2745, 7
  %v2881 = vsel %vm143, %v2879, %v2880
  %v2882 = vrot.slane %v2746, 7
  %v2883 = vrot.slane %v2747, 7
  %v2884 = vsel %vm143, %v2882, %v2883
  %v2885 = vrot.slane %v2748, 7
  %v2886 = vrot.slane %v2749, 7
  %v2887 = vsel %vm143, %v2885, %v2886
  %v2888 = vrot.slane %v2750, 7
  %v2889 = vrot.slane %v2751, 7
  %v2890 = vsel %vm143, %v2888, %v2889
  %v2891 = vrot.slane %v2752, 7
  %v2892 = vrot.slane %v2753, 7
  %v2893 = vsel %vm143, %v2891, %v2892
  %v2894 = vrot.slane %v2754, 7
  %v2895 = vrot.slane %v2755, 7
  %v2896 = vsel %vm143, %v2894, %v2895
  %v2897 = vrot.slane %v2756, 7
  %v2898 = vrot.slane %v2757, 7
  %v2899 = vsel %vm143, %v2897, %v2898
  %v2900 = vrot.slane %v2758, 7
  %v2901 = vrot.slane %v2759, 7
  %v2902 = vsel %vm143, %v2900, %v2901
  %v2903 = vrot.slane %v2760, 7
  %v2904 = vrot.slane %v2761, 7
  %v2905 = vsel %vm143, %v2903, %v2904
  %v2906 = vrot.slane %v2762, 7
  %v2907 = vrot.slane %v2763, 7
  %v2908 = vsel %vm143, %v2906, %v2907
  %v2909 = vrot.slane %v2764, 7
  %v2910 = vrot.slane %v2765, 7
  %v2911 = vsel %vm143, %v2909, %v2910
  %v2912 = vrot.slane %v2766, 7
  %v2913 = vrot.slane %v2767, 7
  %v2914 = vsel %vm143, %v2912, %v2913
  %v2915 = vrot.slane %v2768, 7
  %v2916 = vrot.slane %v2769, 7
  %v2917 = vsel %vm143, %v2915, %v2916
  %v2918 = vrot.slane %v2770, 7
  %v2919 = vrot.slane %v2771, 7
  %v2920 = vsel %vm143, %v2918, %v2919
  %v2921 = vrot.slane %v2772, 7
  %v2922 = vrot.slane %v2773, 7
  %v2923 = vsel %vm143, %v2921, %v2922
  %v2924 = vrot.slane %v2774, 7
  %v2925 = vrot.slane %v2775, 7
  %v2926 = vsel %vm143, %v2924, %v2925
  %v2927 = vrot.slane %v2776, 7
  %v2928 = vrot.slane %v2777, 7
  %v2929 = vsel %vm143, %v2927, %v2928
  %v2930 = vrot.slane %v2778, 7
  %v2931 = vrot.slane %v2779, 7
  %v2932 = vsel %vm143, %v2930, %v2931
  %v2933 = vrot.slane %v2780, 7
  %v2934 = vrot.slane %v2781, 7
  %v2935 = vsel %vm143, %v2933, %v2934
  %v2936 = vrot.slane %v2782, 7
  %v2937 = vrot.slane %v2783, 7
  %v2938 = vsel %vm143, %v2936, %v2937
  %v3032 = vadd.f32 %v2622, %v2846
  %v3033 = vadd.f32 %v2623, %v2848
  %v3034 = vadd.f32 %v2624, %v2847
  %v3035 = vadd.f32 %v2625, %v2849
  %v3036 = vadd.f32 %v2626, %v2851
  %v3037 = vadd.f32 %v2627, %v2850
  %v3038 = vadd.f32 %v2628, %v2852
  %v3039 = vadd.f32 %v2629, %v2854
  %v3040 = vadd.f32 %v2630, %v2853
  %v3041 = vadd.f32 %v2631, %v2855
  %v3042 = vadd.f32 %v2632, %v2857
  %v3043 = vadd.f32 %v2633, %v2856
  %v3044 = vadd.f32 %v2634, %v2858
  %v3045 = vadd.f32 %v2635, %v2860
  %v3046 = vadd.f32 %v2636, %v2859
  %v3047 = vadd.f32 %v2637, %v2861
  %v3048 = vadd.f32 %v2638, %v2863
  %v3049 = vadd.f32 %v2639, %v2862
  %v3050 = vadd.f32 %v2640, %v2864
  %v3051 = vadd.f32 %v2641, %v2866
  %v3052 = vadd.f32 %v2642, %v2865
  %v3053 = vadd.f32 %v2643, %v2867
  %v3054 = vadd.f32 %v2644, %v2869
  %v3055 = vadd.f32 %v2645, %v2868
  %v3056 = vadd.f32 %v2646, %v2870
  %v3057 = vadd.f32 %v2647, %v2872
  %v3058 = vadd.f32 %v2648, %v2871
  %v3059 = vadd.f32 %v2649, %v2873
  %v3060 = vadd.f32 %v2650, %v2875
  %v3061 = vadd.f32 %v2651, %v2874
  %v3062 = vadd.f32 %v2652, %v2876
  %v3063 = vadd.f32 %v2653, %v2878
  %v3064 = vadd.f32 %v2654, %v2877
  %v3065 = vadd.f32 %v2655, %v2879
  %v3066 = vadd.f32 %v2656, %v2881
  %v3067 = vadd.f32 %v2657, %v2880
  %v3068 = vadd.f32 %v2658, %v2882
  %v3069 = vadd.f32 %v2659, %v2884
  %v3070 = vadd.f32 %v2660, %v2883
  %v3071 = vadd.f32 %v2661, %v2885
  %v3072 = vadd.f32 %v2662, %v2887
  %v3073 = vadd.f32 %v2663, %v2886
  %v3074 = vadd.f32 %v2664, %v2888
  %v3075 = vadd.f32 %v2665, %v2890
  %v3076 = vadd.f32 %v2666, %v2889
  %v3077 = vadd.f32 %v2667, %v2891
  %v3078 = vadd.f32 %v2668, %v2893
  %v3079 = vadd.f32 %v2669, %v2892
  %v3080 = vadd.f32 %v2670, %v2894
  %v3081 = vadd.f32 %v2671, %v2896
  %v3082 = vadd.f32 %v2672, %v2895
  %v3083 = vadd.f32 %v2673, %v2897
  %v3084 = vadd.f32 %v2674, %v2899
  %v3085 = vadd.f32 %v2675, %v2898
  %v3086 = vadd.f32 %v2676, %v2900
  %v3087 = vadd.f32 %v2677, %v2902
  %v3088 = vadd.f32 %v2678, %v2901
  %v3089 = vadd.f32 %v2679, %v2903
  %v3090 = vadd.f32 %v2680, %v2905
  %v3091 = vadd.f32 %v2681, %v2904
  %v3092 = vadd.f32 %v2682, %v2906
  %v3093 = vadd.f32 %v2683, %v2908
  %v3094 = vadd.f32 %v2684, %v2907
  %v3095 = vadd.f32 %v2685, %v2909
  %v3096 = vadd.f32 %v2686, %v2911
  %v3097 = vadd.f32 %v2687, %v2910
  %v3098 = vadd.f32 %v2688, %v2912
  %v3099 = vadd.f32 %v2689, %v2914
  %v3100 = vadd.f32 %v2690, %v2913
  %v3101 = vadd.f32 %v2691, %v2915
  %v3102 = vadd.f32 %v2692, %v2917
  %v3103 = vadd.f32 %v2693, %v2916
  %v3104 = vadd.f32 %v2694, %v2918
  %v3105 = vadd.f32 %v2695, %v2920
  %v3106 = vadd.f32 %v2696, %v2919
  %v3107 = vadd.f32 %v2697, %v2921
  %v3108 = vadd.f32 %v2698, %v2923
  %v3109 = vadd.f32 %v2699, %v2922
  %v3110 = vadd.f32 %v2700, %v2924
  %v3111 = vadd.f32 %v2701, %v2926
  %v3112 = vadd.f32 %v2702, %v2925
  %v3113 = vadd.f32 %v2703, %v2927
  %v3114 = vadd.f32 %v2704, %v2929
  %v3115 = vadd.f32 %v2705, %v2928
  %v3116 = vadd.f32 %v2706, %v2930
  %v3117 = vadd.f32 %v2707, %v2932
  %v3118 = vadd.f32 %v2708, %v2931
  %v3119 = vadd.f32 %v2709, %v2933
  %v3120 = vadd.f32 %v2710, %v2935
  %v3121 = vadd.f32 %v2711, %v2934
  %v3122 = vadd.f32 %v2712, %v2936
  %v3123 = vadd.f32 %v2713, %v2938
  %v3124 = vadd.f32 %v2714, %v2937
  %v3125 = vadd.f32 %v2715, %v2891
  %v3126 = vadd.f32 %v2716, %v2893
  %v3127 = vadd.f32 %v2717, %v2892
  %v3128 = vlaneseq
  %v3129 = vshrl.u32 %v3128, 7
  %v3130 = vsub.s32 1, %v3129
  %v3131 = vrot.slane %v408, %v3130
  %v3132 = vmul.f32 %v342, %v3131
  %v3133 = vmul.f32 %v151, %v3131
  %v3134 = vmul.f32 %v375, %v3131
  %v3135 = vmul.f32 %v343, %v3131
  %v3136 = vmul.f32 %v154, %v3131
  %v3137 = vmul.f32 %v376, %v3131
  %v3138 = vmul.f32 %v344, %v3131
  %v3139 = vmul.f32 %v157, %v3131
  %v3140 = vmul.f32 %v377, %v3131
  %v3141 = vmul.f32 %v345, %v3131
  %v3142 = vmul.f32 %v160, %v3131
  %v3143 = vmul.f32 %v378, %v3131
  %v3144 = vmul.f32 %v346, %v3131
  %v3145 = vmul.f32 %v163, %v3131
  %v3146 = vmul.f32 %v379, %v3131
  %v3147 = vmul.f32 %v347, %v3131
  %v3148 = vmul.f32 %v166, %v3131
  %v3149 = vmul.f32 %v380, %v3131
  %v3150 = vmul.f32 %v348, %v3131
  %v3151 = vmul.f32 %v169, %v3131
  %v3152 = vmul.f32 %v381, %v3131
  %v3153 = vmul.f32 %v349, %v3131
  %v3154 = vmul.f32 %v172, %v3131
  %v3155 = vmul.f32 %v382, %v3131
  %v3156 = vmul.f32 %v350, %v3131
  %v3157 = vmul.f32 %v175, %v3131
  %v3158 = vmul.f32 %v383, %v3131
  %v3159 = vmul.f32 %v351, %v3131
  %v3160 = vmul.f32 %v178, %v3131
  %v3161 = vmul.f32 %v384, %v3131
  %v3162 = vmul.f32 %v352, %v3131
  %v3163 = vmul.f32 %v181, %v3131
  %v3164 = vmul.f32 %v385, %v3131
  %v3165 = vmul.f32 %v353, %v3131
  %v3166 = vmul.f32 %v184, %v3131
  %v3167 = vmul.f32 %v386, %v3131
  %v3168 = vmul.f32 %v354, %v3131
  %v3169 = vmul.f32 %v187, %v3131
  %v3170 = vmul.f32 %v387, %v3131
  %v3171 = vmul.f32 %v355, %v3131
  %v3172 = vmul.f32 %v190, %v3131
  %v3173 = vmul.f32 %v388, %v3131
  %v3174 = vmul.f32 %v356, %v3131
  %v3175 = vmul.f32 %v193, %v3131
  %v3176 = vmul.f32 %v389, %v3131
  %v3177 = vmul.f32 %v340, %v3131
  %v3178 = vmul.f32 %v145, %v3131
  %v3179 = vmul.f32 %v373, %v3131
  %v3180 = vmul.f32 %v358, %v3131
  %v3181 = vmul.f32 %v199, %v3131
  %v3182 = vmul.f32 %v391, %v3131
  %v3183 = vmul.f32 %v359, %v3131
  %v3184 = vmul.f32 %v202, %v3131
  %v3185 = vmul.f32 %v392, %v3131
  %v3186 = vmul.f32 %v360, %v3131
  %v3187 = vmul.f32 %v205, %v3131
  %v3188 = vmul.f32 %v393, %v3131
  %v3189 = vmul.f32 %v361, %v3131
  %v3190 = vmul.f32 %v208, %v3131
  %v3191 = vmul.f32 %v394, %v3131
  %v3192 = vmul.f32 %v362, %v3131
  %v3193 = vmul.f32 %v211, %v3131
  %v3194 = vmul.f32 %v395, %v3131
  %v3195 = vmul.f32 %v363, %v3131
  %v3196 = vmul.f32 %v214, %v3131
  %v3197 = vmul.f32 %v396, %v3131
  %v3198 = vmul.f32 %v364, %v3131
  %v3199 = vmul.f32 %v217, %v3131
  %v3200 = vmul.f32 %v397, %v3131
  %v3201 = vmul.f32 %v365, %v3131
  %v3202 = vmul.f32 %v220, %v3131
  %v3203 = vmul.f32 %v398, %v3131
  %v3204 = vmul.f32 %v366, %v3131
  %v3205 = vmul.f32 %v223, %v3131
  %v3206 = vmul.f32 %v399, %v3131
  %v3207 = vmul.f32 %v367, %v3131
  %v3208 = vmul.f32 %v226, %v3131
  %v3209 = vmul.f32 %v400, %v3131
  %v3210 = vmul.f32 %v368, %v3131
  %v3211 = vmul.f32 %v229, %v3131
  %v3212 = vmul.f32 %v401, %v3131
  %v3213 = vmul.f32 %v369, %v3131
  %v3214 = vmul.f32 %v232, %v3131
  %v3215 = vmul.f32 %v402, %v3131
  %v3216 = vmul.f32 %v370, %v3131
  %v3217 = vmul.f32 %v235, %v3131
  %v3218 = vmul.f32 %v403, %v3131
  %v3219 = vmul.f32 %v371, %v3131
  %v3220 = vmul.f32 %v238, %v3131
  %v3221 = vmul.f32 %v404, %v3131
  %v3222 = vmul.f32 %v372, %v3131
  %v3223 = vmul.f32 %v241, %v3131
  %v3224 = vmul.f32 %v405, %v3131
  %v3225 = vadd.f32 %v3032, %v3132
  %v3226 = vadd.f32 %v3033, %v3133
  %v3227 = vadd.f32 %v3034, %v3134
  %v3228 = vadd.f32 %v3035, %v3135
  %v3229 = vadd.f32 %v3036, %v3136
  %v3230 = vadd.f32 %v3037, %v3137
  %v3231 = vadd.f32 %v3038, %v3138
  %v3232 = vadd.f32 %v3039, %v3139
  %v3233 = vadd.f32 %v3040, %v3140
  %v3234 = vadd.f32 %v3041, %v3141
  %v3235 = vadd.f32 %v3042, %v3142
  %v3236 = vadd.f32 %v3043, %v3143
  %v3237 = vadd.f32 %v3044, %v3144
  %v3238 = vadd.f32 %v3045, %v3145
  %v3239 = vadd.f32 %v3046, %v3146
  %v3240 = vadd.f32 %v3047, %v3147
  %v3241 = vadd.f32 %v3048, %v3148
  %v3242 = vadd.f32 %v3049, %v3149
  %v3243 = vadd.f32 %v3050, %v3150
  %v3244 = vadd.f32 %v3051, %v3151
  %v3245 = vadd.f32 %v3052, %v3152
  %v3246 = vadd.f32 %v3053, %v3153
  %v3247 = vadd.f32 %v3054, %v3154
  %v3248 = vadd.f32 %v3055, %v3155
  %v3249 = vadd.f32 %v3056, %v3156
  %v3250 = vadd.f32 %v3057, %v3157
  %v3251 = vadd.f32 %v3058, %v3158
  %v3252 = vadd.f32 %v3059, %v3159
  %v3253 = vadd.f32 %v3060, %v3160
  %v3254 = vadd.f32 %v3061, %v3161
  %v3255 = vadd.f32 %v3062, %v3162
  %v3256 = vadd.f32 %v3063, %v3163
  %v3257 = vadd.f32 %v3064, %v3164
  %v3258 = vadd.f32 %v3065, %v3165
  %v3259 = vadd.f32 %v3066, %v3166
  %v3260 = vadd.f32 %v3067, %v3167
  %v3261 = vadd.f32 %v3068, %v3168
  %v3262 = vadd.f32 %v3069, %v3169
  %v3263 = vadd.f32 %v3070, %v3170
  %v3264 = vadd.f32 %v3071, %v3171
  %v3265 = vadd.f32 %v3072, %v3172
  %v3266 = vadd.f32 %v3073, %v3173
  %v3267 = vadd.f32 %v3074, %v3174
  %v3268 = vadd.f32 %v3075, %v3175
  %v3269 = vadd.f32 %v3076, %v3176
  %v3270 = vadd.f32 %v3077, %v3177
  %v3271 = vadd.f32 %v3078, %v3178
  %v3272 = vadd.f32 %v3079, %v3179
  %v3273 = vadd.f32 %v3080, %v3180
  %v3274 = vadd.f32 %v3081, %v3181
  %v3275 = vadd.f32 %v3082, %v3182
  %v3276 = vadd.f32 %v3083, %v3183
  %v3277 = vadd.f32 %v3084, %v3184
  %v3278 = vadd.f32 %v3085, %v3185
  %v3279 = vadd.f32 %v3086, %v3186
  %v3280 = vadd.f32 %v3087, %v3187
  %v3281 = vadd.f32 %v3088, %v3188
  %v3282 = vadd.f32 %v3089, %v3189
  %v3283 = vadd.f32 %v3090, %v3190
  %v3284 = vadd.f32 %v3091, %v3191
  %v3285 = vadd.f32 %v3092, %v3192
  %v3286 = vadd.f32 %v3093, %v3193
  %v3287 = vadd.f32 %v3094, %v3194
  %v3288 = vadd.f32 %v3095, %v3195
  %v3289 = vadd.f32 %v3096, %v3196
  %v3290 = vadd.f32 %v3097, %v3197
  %v3291 = vadd.f32 %v3098, %v3198
  %v3292 = vadd.f32 %v3099, %v3199
  %v3293 = vadd.f32 %v3100, %v3200
  %v3294 = vadd.f32 %v3101, %v3201
  %v3295 = vadd.f32 %v3102, %v3202
  %v3296 = vadd.f32 %v3103, %v3203
  %v3297 = vadd.f32 %v3104, %v3204
  %v3298 = vadd.f32 %v3105, %v3205
  %v3299 = vadd.f32 %v3106, %v3206
  %v3300 = vadd.f32 %v3107, %v3207
  %v3301 = vadd.f32 %v3108, %v3208
  %v3302 = vadd.f32 %v3109, %v3209
  %v3303 = vadd.f32 %v3110, %v3210
  %v3304 = vadd.f32 %v3111, %v3211
  %v3305 = vadd.f32 %v3112, %v3212
  %v3306 = vadd.f32 %v3113, %v3213
  %v3307 = vadd.f32 %v3114, %v3214
  %v3308 = vadd.f32 %v3115, %v3215
  %v3309 = vadd.f32 %v3116, %v3216
  %v3310 = vadd.f32 %v3117, %v3217
  %v3311 = vadd.f32 %v3118, %v3218
  %v3312 = vadd.f32 %v3119, %v3219
  %v3313 = vadd.f32 %v3120, %v3220
  %v3314 = vadd.f32 %v3121, %v3221
  %v3315 = vadd.f32 %v3122, %v3222
  %v3316 = vadd.f32 %v3123, %v3223
  %v3317 = vadd.f32 %v3124, %v3224
  %v3318 = vadd.f32 %v3125, %v3177
  %v3319 = vadd.f32 %v3126, %v3178
  %v3320 = vadd.f32 %v3127, %v3179
  %v3321 = vlaneseq
  %v3322 = vshrl.u32 %v3321, 7
  %v3323 = vsub.s32 2, %v3322
  %v3324 = vrot.slane %v408, %v3323
  %v3325 = vmul.f32 %v342, %v3324
  %v3326 = vmul.f32 %v151, %v3324
  %v3327 = vmul.f32 %v375, %v3324
  %v3328 = vmul.f32 %v343, %v3324
  %v3329 = vmul.f32 %v154, %v3324
  %v3330 = vmul.f32 %v376, %v3324
  %v3331 = vmul.f32 %v344, %v3324
  %v3332 = vmul.f32 %v157, %v3324
  %v3333 = vmul.f32 %v377, %v3324
  %v3334 = vmul.f32 %v345, %v3324
  %v3335 = vmul.f32 %v160, %v3324
  %v3336 = vmul.f32 %v378, %v3324
  %v3337 = vmul.f32 %v346, %v3324
  %v3338 = vmul.f32 %v163, %v3324
  %v3339 = vmul.f32 %v379, %v3324
  %v3340 = vmul.f32 %v347, %v3324
  %v3341 = vmul.f32 %v166, %v3324
  %v3342 = vmul.f32 %v380, %v3324
  %v3343 = vmul.f32 %v348, %v3324
  %v3344 = vmul.f32 %v169, %v3324
  %v3345 = vmul.f32 %v381, %v3324
  %v3346 = vmul.f32 %v349, %v3324
  %v3347 = vmul.f32 %v172, %v3324
  %v3348 = vmul.f32 %v382, %v3324
  %v3349 = vmul.f32 %v350, %v3324
  %v3350 = vmul.f32 %v175, %v3324
  %v3351 = vmul.f32 %v383, %v3324
  %v3352 = vmul.f32 %v351, %v3324
  %v3353 = vmul.f32 %v178, %v3324
  %v3354 = vmul.f32 %v384, %v3324
  %v3355 = vmul.f32 %v352, %v3324
  %v3356 = vmul.f32 %v181, %v3324
  %v3357 = vmul.f32 %v385, %v3324
  %v3358 = vmul.f32 %v353, %v3324
  %v3359 = vmul.f32 %v184, %v3324
  %v3360 = vmul.f32 %v386, %v3324
  %v3361 = vmul.f32 %v354, %v3324
  %v3362 = vmul.f32 %v187, %v3324
  %v3363 = vmul.f32 %v387, %v3324
  %v3364 = vmul.f32 %v355, %v3324
  %v3365 = vmul.f32 %v190, %v3324
  %v3366 = vmul.f32 %v388, %v3324
  %v3367 = vmul.f32 %v356, %v3324
  %v3368 = vmul.f32 %v193, %v3324
  %v3369 = vmul.f32 %v389, %v3324
  %v3370 = vmul.f32 %v340, %v3324
  %v3371 = vmul.f32 %v145, %v3324
  %v3372 = vmul.f32 %v373, %v3324
  %v3373 = vmul.f32 %v358, %v3324
  %v3374 = vmul.f32 %v199, %v3324
  %v3375 = vmul.f32 %v391, %v3324
  %v3376 = vmul.f32 %v359, %v3324
  %v3377 = vmul.f32 %v202, %v3324
  %v3378 = vmul.f32 %v392, %v3324
  %v3379 = vmul.f32 %v360, %v3324
  %v3380 = vmul.f32 %v205, %v3324
  %v3381 = vmul.f32 %v393, %v3324
  %v3382 = vmul.f32 %v361, %v3324
  %v3383 = vmul.f32 %v208, %v3324
  %v3384 = vmul.f32 %v394, %v3324
  %v3385 = vmul.f32 %v362, %v3324
  %v3386 = vmul.f32 %v211, %v3324
  %v3387 = vmul.f32 %v395, %v3324
  %v3388 = vmul.f32 %v363, %v3324
  %v3389 = vmul.f32 %v214, %v3324
  %v3390 = vmul.f32 %v396, %v3324
  %v3391 = vmul.f32 %v364, %v3324
  %v3392 = vmul.f32 %v217, %v3324
  %v3393 = vmul.f32 %v397, %v3324
  %v3394 = vmul.f32 %v365, %v3324
  %v3395 = vmul.f32 %v220, %v3324
  %v3396 = vmul.f32 %v398, %v3324
  %v3397 = vmul.f32 %v366, %v3324
  %v3398 = vmul.f32 %v223, %v3324
  %v3399 = vmul.f32 %v399, %v3324
  %v3400 = vmul.f32 %v367, %v3324
  %v3401 = vmul.f32 %v226, %v3324
  %v3402 = vmul.f32 %v400, %v3324
  %v3403 = vmul.f32 %v368, %v3324
  %v3404 = vmul.f32 %v229, %v3324
  %v3405 = vmul.f32 %v401, %v3324
  %v3406 = vmul.f32 %v369, %v3324
  %v3407 = vmul.f32 %v232, %v3324
  %v3408 = vmul.f32 %v402, %v3324
  %v3409 = vmul.f32 %v370, %v3324
  %v3410 = vmul.f32 %v235, %v3324
  %v3411 = vmul.f32 %v403, %v3324
  %v3412 = vmul.f32 %v371, %v3324
  %v3413 = vmul.f32 %v238, %v3324
  %v3414 = vmul.f32 %v404, %v3324
  %v3415 = vmul.f32 %v372, %v3324
  %v3416 = vmul.f32 %v241, %v3324
  %v3417 = vmul.f32 %v405, %v3324
  %v3511 = vrot.slane %v3325, 1
  %v3512 = vrot.slane %v3326, 1
  %v3513 = vsel %vm1405, %v3511, %v3512
  %v3514 = vrot.slane %v3327, 1
  %v3515 = vsel %vm1405, %v3512, %v3514
  %v3516 = vrot.slane %v3328, 1
  %v3517 = vrot.slane %v3329, 1
  %v3518 = vsel %vm1405, %v3516, %v3517
  %v3519 = vrot.slane %v3330, 1
  %v3520 = vsel %vm1405, %v3517, %v3519
  %v3521 = vrot.slane %v3331, 1
  %v3522 = vrot.slane %v3332, 1
  %v3523 = vsel %vm1405, %v3521, %v3522
  %v3524 = vrot.slane %v3333, 1
  %v3525 = vsel %vm1405, %v3522, %v3524
  %v3526 = vrot.slane %v3334, 1
  %v3527 = vrot.slane %v3335, 1
  %v3528 = vsel %vm1405, %v3526, %v3527
  %v3529 = vrot.slane %v3336, 1
  %v3530 = vsel %vm1405, %v3527, %v3529
  %v3531 = vrot.slane %v3337, 1
  %v3532 = vrot.slane %v3338, 1
  %v3533 = vsel %vm1405, %v3531, %v3532
  %v3534 = vrot.slane %v3339, 1
  %v3535 = vsel %vm1405, %v3532, %v3534
  %v3536 = vrot.slane %v3340, 1
  %v3537 = vrot.slane %v3341, 1
  %v3538 = vsel %vm1405, %v3536, %v3537
  %v3539 = vrot.slane %v3342, 1
  %v3540 = vsel %vm1405, %v3537, %v3539
  %v3541 = vrot.slane %v3343, 1
  %v3542 = vrot.slane %v3344, 1
  %v3543 = vsel %vm1405, %v3541, %v3542
  %v3544 = vrot.slane %v3345, 1
  %v3545 = vsel %vm1405, %v3542, %v3544
  %v3546 = vrot.slane %v3346, 1
  %v3547 = vrot.slane %v3347, 1
  %v3548 = vsel %vm1405, %v3546, %v3547
  %v3549 = vrot.slane %v3348, 1
  %v3550 = vsel %vm1405, %v3547, %v3549
  %v3551 = vrot.slane %v3349, 1
  %v3552 = vrot.slane %v3350, 1
  %v3553 = vsel %vm1405, %v3551, %v3552
  %v3554 = vrot.slane %v3351, 1
  %v3555 = vsel %vm1405, %v3552, %v3554
  %v3556 = vrot.slane %v3352, 1
  %v3557 = vrot.slane %v3353, 1
  %v3558 = vsel %vm1405, %v3556, %v3557
  %v3559 = vrot.slane %v3354, 1
  %v3560 = vsel %vm1405, %v3557, %v3559
  %v3561 = vrot.slane %v3355, 1
  %v3562 = vrot.slane %v3356, 1
  %v3563 = vsel %vm1405, %v3561, %v3562
  %v3564 = vrot.slane %v3357, 1
  %v3565 = vsel %vm1405, %v3562, %v3564
  %v3566 = vrot.slane %v3358, 1
  %v3567 = vrot.slane %v3359, 1
  %v3568 = vsel %vm1405, %v3566, %v3567
  %v3569 = vrot.slane %v3360, 1
  %v3570 = vsel %vm1405, %v3567, %v3569
  %v3571 = vrot.slane %v3361, 1
  %v3572 = vrot.slane %v3362, 1
  %v3573 = vsel %vm1405, %v3571, %v3572
  %v3574 = vrot.slane %v3363, 1
  %v3575 = vsel %vm1405, %v3572, %v3574
  %v3576 = vrot.slane %v3364, 1
  %v3577 = vrot.slane %v3365, 1
  %v3578 = vsel %vm1405, %v3576, %v3577
  %v3579 = vrot.slane %v3366, 1
  %v3580 = vsel %vm1405, %v3577, %v3579
  %v3581 = vrot.slane %v3367, 1
  %v3582 = vrot.slane %v3368, 1
  %v3583 = vsel %vm1405, %v3581, %v3582
  %v3584 = vrot.slane %v3369, 1
  %v3585 = vsel %vm1405, %v3582, %v3584
  %v3586 = vrot.slane %v3370, 1
  %v3587 = vrot.slane %v3371, 1
  %v3588 = vsel %vm1405, %v3586, %v3587
  %v3589 = vrot.slane %v3372, 1
  %v3590 = vsel %vm1405, %v3587, %v3589
  %v3591 = vrot.slane %v3373, 1
  %v3592 = vrot.slane %v3374, 1
  %v3593 = vsel %vm1405, %v3591, %v3592
  %v3594 = vrot.slane %v3375, 1
  %v3595 = vsel %vm1405, %v3592, %v3594
  %v3596 = vrot.slane %v3376, 1
  %v3597 = vrot.slane %v3377, 1
  %v3598 = vsel %vm1405, %v3596, %v3597
  %v3599 = vrot.slane %v3378, 1
  %v3600 = vsel %vm1405, %v3597, %v3599
  %v3601 = vrot.slane %v3379, 1
  %v3602 = vrot.slane %v3380, 1
  %v3603 = vsel %vm1405, %v3601, %v3602
  %v3604 = vrot.slane %v3381, 1
  %v3605 = vsel %vm1405, %v3602, %v3604
  %v3606 = vrot.slane %v3382, 1
  %v3607 = vrot.slane %v3383, 1
  %v3608 = vsel %vm1405, %v3606, %v3607
  %v3609 = vrot.slane %v3384, 1
  %v3610 = vsel %vm1405, %v3607, %v3609
  %v3611 = vrot.slane %v3385, 1
  %v3612 = vrot.slane %v3386, 1
  %v3613 = vsel %vm1405, %v3611, %v3612
  %v3614 = vrot.slane %v3387, 1
  %v3615 = vsel %vm1405, %v3612, %v3614
  %v3616 = vrot.slane %v3388, 1
  %v3617 = vrot.slane %v3389, 1
  %v3618 = vsel %vm1405, %v3616, %v3617
  %v3619 = vrot.slane %v3390, 1
  %v3620 = vsel %vm1405, %v3617, %v3619
  %v3621 = vrot.slane %v3391, 1
  %v3622 = vrot.slane %v3392, 1
  %v3623 = vsel %vm1405, %v3621, %v3622
  %v3624 = vrot.slane %v3393, 1
  %v3625 = vsel %vm1405, %v3622, %v3624
  %v3626 = vrot.slane %v3394, 1
  %v3627 = vrot.slane %v3395, 1
  %v3628 = vsel %vm1405, %v3626, %v3627
  %v3629 = vrot.slane %v3396, 1
  %v3630 = vsel %vm1405, %v3627, %v3629
  %v3631 = vrot.slane %v3397, 1
  %v3632 = vrot.slane %v3398, 1
  %v3633 = vsel %vm1405, %v3631, %v3632
  %v3634 = vrot.slane %v3399, 1
  %v3635 = vsel %vm1405, %v3632, %v3634
  %v3636 = vrot.slane %v3400, 1
  %v3637 = vrot.slane %v3401, 1
  %v3638 = vsel %vm1405, %v3636, %v3637
  %v3639 = vrot.slane %v3402, 1
  %v3640 = vsel %vm1405, %v3637, %v3639
  %v3641 = vrot.slane %v3403, 1
  %v3642 = vrot.slane %v3404, 1
  %v3643 = vsel %vm1405, %v3641, %v3642
  %v3644 = vrot.slane %v3405, 1
  %v3645 = vsel %vm1405, %v3642, %v3644
  %v3646 = vrot.slane %v3406, 1
  %v3647 = vrot.slane %v3407, 1
  %v3648 = vsel %vm1405, %v3646, %v3647
  %v3649 = vrot.slane %v3408, 1
  %v3650 = vsel %vm1405, %v3647, %v3649
  %v3651 = vrot.slane %v3409, 1
  %v3652 = vrot.slane %v3410, 1
  %v3653 = vsel %vm1405, %v3651, %v3652
  %v3654 = vrot.slane %v3411, 1
  %v3655 = vsel %vm1405, %v3652, %v3654
  %v3656 = vrot.slane %v3412, 1
  %v3657 = vrot.slane %v3413, 1
  %v3658 = vsel %vm1405, %v3656, %v3657
  %v3659 = vrot.slane %v3414, 1
  %v3660 = vsel %vm1405, %v3657, %v3659
  %v3661 = vrot.slane %v3415, 1
  %v3662 = vrot.slane %v3416, 1
  %v3663 = vsel %vm1405, %v3661, %v3662
  %v3664 = vrot.slane %v3417, 1
  %v3665 = vsel %vm1405, %v3662, %v3664
  %v3759 = vadd.f32 %v3225, %v3513
  %v3760 = vadd.f32 %v3226, %v3515
  %v3761 = vadd.f32 %v3227, %v3514
  %v3762 = vadd.f32 %v3228, %v3518
  %v3763 = vadd.f32 %v3229, %v3520
  %v3764 = vadd.f32 %v3230, %v3519
  %v3765 = vadd.f32 %v3231, %v3523
  %v3766 = vadd.f32 %v3232, %v3525
  %v3767 = vadd.f32 %v3233, %v3524
  %v3768 = vadd.f32 %v3234, %v3528
  %v3769 = vadd.f32 %v3235, %v3530
  %v3770 = vadd.f32 %v3236, %v3529
  %v3771 = vadd.f32 %v3237, %v3533
  %v3772 = vadd.f32 %v3238, %v3535
  %v3773 = vadd.f32 %v3239, %v3534
  %v3774 = vadd.f32 %v3240, %v3538
  %v3775 = vadd.f32 %v3241, %v3540
  %v3776 = vadd.f32 %v3242, %v3539
  %v3777 = vadd.f32 %v3243, %v3543
  %v3778 = vadd.f32 %v3244, %v3545
  %v3779 = vadd.f32 %v3245, %v3544
  %v3780 = vadd.f32 %v3246, %v3548
  %v3781 = vadd.f32 %v3247, %v3550
  %v3782 = vadd.f32 %v3248, %v3549
  %v3783 = vadd.f32 %v3249, %v3553
  %v3784 = vadd.f32 %v3250, %v3555
  %v3785 = vadd.f32 %v3251, %v3554
  %v3786 = vadd.f32 %v3252, %v3558
  %v3787 = vadd.f32 %v3253, %v3560
  %v3788 = vadd.f32 %v3254, %v3559
  %v3789 = vadd.f32 %v3255, %v3563
  %v3790 = vadd.f32 %v3256, %v3565
  %v3791 = vadd.f32 %v3257, %v3564
  %v3792 = vadd.f32 %v3258, %v3568
  %v3793 = vadd.f32 %v3259, %v3570
  %v3794 = vadd.f32 %v3260, %v3569
  %v3795 = vadd.f32 %v3261, %v3573
  %v3796 = vadd.f32 %v3262, %v3575
  %v3797 = vadd.f32 %v3263, %v3574
  %v3798 = vadd.f32 %v3264, %v3578
  %v3799 = vadd.f32 %v3265, %v3580
  %v3800 = vadd.f32 %v3266, %v3579
  %v3801 = vadd.f32 %v3267, %v3583
  %v3802 = vadd.f32 %v3268, %v3585
  %v3803 = vadd.f32 %v3269, %v3584
  %v3804 = vadd.f32 %v3270, %v3588
  %v3805 = vadd.f32 %v3271, %v3590
  %v3806 = vadd.f32 %v3272, %v3589
  %v3807 = vadd.f32 %v3273, %v3593
  %v3808 = vadd.f32 %v3274, %v3595
  %v3809 = vadd.f32 %v3275, %v3594
  %v3810 = vadd.f32 %v3276, %v3598
  %v3811 = vadd.f32 %v3277, %v3600
  %v3812 = vadd.f32 %v3278, %v3599
  %v3813 = vadd.f32 %v3279, %v3603
  %v3814 = vadd.f32 %v3280, %v3605
  %v3815 = vadd.f32 %v3281, %v3604
  %v3816 = vadd.f32 %v3282, %v3608
  %v3817 = vadd.f32 %v3283, %v3610
  %v3818 = vadd.f32 %v3284, %v3609
  %v3819 = vadd.f32 %v3285, %v3613
  %v3820 = vadd.f32 %v3286, %v3615
  %v3821 = vadd.f32 %v3287, %v3614
  %v3822 = vadd.f32 %v3288, %v3618
  %v3823 = vadd.f32 %v3289, %v3620
  %v3824 = vadd.f32 %v3290, %v3619
  %v3825 = vadd.f32 %v3291, %v3623
  %v3826 = vadd.f32 %v3292, %v3625
  %v3827 = vadd.f32 %v3293, %v3624
  %v3828 = vadd.f32 %v3294, %v3628
  %v3829 = vadd.f32 %v3295, %v3630
  %v3830 = vadd.f32 %v3296, %v3629
  %v3831 = vadd.f32 %v3297, %v3633
  %v3832 = vadd.f32 %v3298, %v3635
  %v3833 = vadd.f32 %v3299, %v3634
  %v3834 = vadd.f32 %v3300, %v3638
  %v3835 = vadd.f32 %v3301, %v3640
  %v3836 = vadd.f32 %v3302, %v3639
  %v3837 = vadd.f32 %v3303, %v3643
  %v3838 = vadd.f32 %v3304, %v3645
  %v3839 = vadd.f32 %v3305, %v3644
  %v3840 = vadd.f32 %v3306, %v3648
  %v3841 = vadd.f32 %v3307, %v3650
  %v3842 = vadd.f32 %v3308, %v3649
  %v3843 = vadd.f32 %v3309, %v3653
  %v3844 = vadd.f32 %v3310, %v3655
  %v3845 = vadd.f32 %v3311, %v3654
  %v3846 = vadd.f32 %v3312, %v3658
  %v3847 = vadd.f32 %v3313, %v3660
  %v3848 = vadd.f32 %v3314, %v3659
  %v3849 = vadd.f32 %v3315, %v3663
  %v3850 = vadd.f32 %v3316, %v3665
  %v3851 = vadd.f32 %v3317, %v3664
  %v3852 = vadd.f32 %v3318, %v3588
  %v3853 = vadd.f32 %v3319, %v3590
  %v3854 = vadd.f32 %v3320, %v3589
  %vm3855 = vcmask 64513
  %3856 = vst.msk [vmem:[%s3 - $0x1] sm:$0xfe] %vm3855, %v3759
  %vm3857 = vcmask 64512
  %3858 = vst.msk [vmem:[%s3 + $0x7] sm:$0xff] %vm3857, %v3760
  %vm3859 = vcmask 57344
  %3860 = vst.msk [vmem:[%s3 + $0xf] sm:$0x1] %vm3859, %v3761
  %3861 = vst.msk [vmem:[%s3 + $0xf] sm:$0xfe] %vm3855, %v3762
  %3862 = vst.msk [vmem:[%s3 + $0x17] sm:$0xff] %vm3857, %v3763
  %3863 = vst.msk [vmem:[%s3 + $0x1f] sm:$0x1] %vm3859, %v3764
  %3864 = vst.msk [vmem:[%s3 + $0x1f] sm:$0xfe] %vm3855, %v3765
  %3865 = vst.msk [vmem:[%s3 + $0x27] sm:$0xff] %vm3857, %v3766
  %3866 = vst.msk [vmem:[%s3 + $0x2f] sm:$0x1] %vm3859, %v3767
  %3867 = vst.msk [vmem:[%s3 + $0x2f] sm:$0xfe] %vm3855, %v3768
  %3868 = vst.msk [vmem:[%s3 + $0x37] sm:$0xff] %vm3857, %v3769
  %3869 = vst.msk [vmem:[%s3 + $0x3f] sm:$0x1] %vm3859, %v3770
  %3870 = vst.msk [vmem:[%s3 + $0x3f] sm:$0xfe] %vm3855, %v3771
  %3871 = vst.msk [vmem:[%s3 + $0x47] sm:$0xff] %vm3857, %v3772
  %3872 = vst.msk [vmem:[%s3 + $0x4f] sm:$0x1] %vm3859, %v3773
  %3873 = vst.msk [vmem:[%s3 + $0x4f] sm:$0xfe] %vm3855, %v3774
  %3874 = vst.msk [vmem:[%s3 + $0x57] sm:$0xff] %vm3857, %v3775
  %3875 = vst.msk [vmem:[%s3 + $0x5f] sm:$0x1] %vm3859, %v3776
  %3876 = vst.msk [vmem:[%s3 + $0x5f] sm:$0xfe] %vm3855, %v3777
  %3877 = vst.msk [vmem:[%s3 + $0x67] sm:$0xff] %vm3857, %v3778
  %3878 = vst.msk [vmem:[%s3 + $0x6f] sm:$0x1] %vm3859, %v3779
  %3879 = vst.msk [vmem:[%s3 + $0x6f] sm:$0xfe] %vm3855, %v3780
  %3880 = vst.msk [vmem:[%s3 + $0x77] sm:$0xff] %vm3857, %v3781
  %3881 = vst.msk [vmem:[%s3 + $0x7f] sm:$0x1] %vm3859, %v3782
  %3882 = vst.msk [vmem:[%s3 + $0x7f] sm:$0xfe] %vm3855, %v3783
  %3883 = vst.msk [vmem:[%s3 + $0x87] sm:$0xff] %vm3857, %v3784
  %3884 = vst.msk [vmem:[%s3 + $0x8f] sm:$0x1] %vm3859, %v3785
  %3885 = vst.msk [vmem:[%s3 + $0x8f] sm:$0xfe] %vm3855, %v3786
  %3886 = vst.msk [vmem:[%s3 + $0x97] sm:$0xff] %vm3857, %v3787
  %3887 = vst.msk [vmem:[%s3 + $0x9f] sm:$0x1] %vm3859, %v3788
  %3888 = vst.msk [vmem:[%s3 + $0x9f] sm:$0xfe] %vm3855, %v3789
  %3889 = vst.msk [vmem:[%s3 + $0xa7] sm:$0xff] %vm3857, %v3790
  %3890 = vst.msk [vmem:[%s3 + $0xaf] sm:$0x1] %vm3859, %v3791
  %3891 = vst.msk [vmem:[%s3 + $0xaf] sm:$0xfe] %vm3855, %v3792
  %3892 = vst.msk [vmem:[%s3 + $0xb7] sm:$0xff] %vm3857, %v3793
  %3893 = vst.msk [vmem:[%s3 + $0xbf] sm:$0x1] %vm3859, %v3794
  %3894 = vst.msk [vmem:[%s3 + $0xbf] sm:$0xfe] %vm3855, %v3795
  %3895 = vst.msk [vmem:[%s3 + $0xc7] sm:$0xff] %vm3857, %v3796
  %3896 = vst.msk [vmem:[%s3 + $0xcf] sm:$0x1] %vm3859, %v3797
  %3897 = vst.msk [vmem:[%s3 + $0xcf] sm:$0xfe] %vm3855, %v3798
  %3898 = vst.msk [vmem:[%s3 + $0xd7] sm:$0xff] %vm3857, %v3799
  %3899 = vst.msk [vmem:[%s3 + $0xdf] sm:$0x1] %vm3859, %v3800
  %3900 = vst.msk [vmem:[%s3 + $0xdf] sm:$0xfe] %vm3855, %v3801
  %3901 = vst.msk [vmem:[%s3 + $0xe7] sm:$0xff] %vm3857, %v3802
  %3902 = vst.msk [vmem:[%s3 + $0xef] sm:$0x1] %vm3859, %v3803
  %3903 = vst.msk [vmem:[%s3 + $0xef] sm:$0xfe] %vm3855, %v3804
  %3904 = vst.msk [vmem:[%s3 + $0xf7] sm:$0xff] %vm3857, %v3805
  %3905 = vst.msk [vmem:[%s3 + $0xff] sm:$0x1] %vm3859, %v3806
  %3906 = vst.msk [vmem:[%s3 + $0xff] sm:$0xfe] %vm3855, %v3807
  %3907 = vst.msk [vmem:[%s3 + $0x107] sm:$0xff] %vm3857, %v3808
  %3908 = vst.msk [vmem:[%s3 + $0x10f] sm:$0x1] %vm3859, %v3809
  %3909 = vst.msk [vmem:[%s3 + $0x10f] sm:$0xfe] %vm3855, %v3810
  %3910 = vst.msk [vmem:[%s3 + $0x117] sm:$0xff] %vm3857, %v3811
  %3911 = vst.msk [vmem:[%s3 + $0x11f] sm:$0x1] %vm3859, %v3812
  %3912 = vst.msk [vmem:[%s3 + $0x11f] sm:$0xfe] %vm3855, %v3813
  %3913 = vst.msk [vmem:[%s3 + $0x127] sm:$0xff] %vm3857, %v3814
  %3914 = vst.msk [vmem:[%s3 + $0x12f] sm:$0x1] %vm3859, %v3815
  %3915 = vst.msk [vmem:[%s3 + $0x12f] sm:$0xfe] %vm3855, %v3816
  %3916 = vst.msk [vmem:[%s3 + $0x137] sm:$0xff] %vm3857, %v3817
  %3917 = vst.msk [vmem:[%s3 + $0x13f] sm:$0x1] %vm3859, %v3818
  %3918 = vst.msk [vmem:[%s3 + $0x13f] sm:$0xfe] %vm3855, %v3819
  %3919 = vst.msk [vmem:[%s3 + $0x147] sm:$0xff] %vm3857, %v3820
  %3920 = vst.msk [vmem:[%s3 + $0x14f] sm:$0x1] %vm3859, %v3821
  %3921 = vst.msk [vmem:[%s3 + $0x14f] sm:$0xfe] %vm3855, %v3822
  %3922 = vst.msk [vmem:[%s3 + $0x157] sm:$0xff] %vm3857, %v3823
  %3923 = vst.msk [vmem:[%s3 + $0x15f] sm:$0x1] %vm3859, %v3824
  %3924 = vst.msk [vmem:[%s3 + $0x15f] sm:$0xfe] %vm3855, %v3825
  %3925 = vst.msk [vmem:[%s3 + $0x167] sm:$0xff] %vm3857, %v3826
  %3926 = vst.msk [vmem:[%s3 + $0x16f] sm:$0x1] %vm3859, %v3827
  %3927 = vst.msk [vmem:[%s3 + $0x16f] sm:$0xfe] %vm3855, %v3828
  %3928 = vst.msk [vmem:[%s3 + $0x177] sm:$0xff] %vm3857, %v3829
  %3929 = vst.msk [vmem:[%s3 + $0x17f] sm:$0x1] %vm3859, %v3830
  %3930 = vst.msk [vmem:[%s3 + $0x17f] sm:$0xfe] %vm3855, %v3831
  %3931 = vst.msk [vmem:[%s3 + $0x187] sm:$0xff] %vm3857, %v3832
  %3932 = vst.msk [vmem:[%s3 + $0x18f] sm:$0x1] %vm3859, %v3833
  %3933 = vst.msk [vmem:[%s3 + $0x18f] sm:$0xfe] %vm3855, %v3834
  %3934 = vst.msk [vmem:[%s3 + $0x197] sm:$0xff] %vm3857, %v3835
  %3935 = vst.msk [vmem:[%s3 + $0x19f] sm:$0x1] %vm3859, %v3836
  %3936 = vst.msk [vmem:[%s3 + $0x19f] sm:$0xfe] %vm3855, %v3837
  %3937 = vst.msk [vmem:[%s3 + $0x1a7] sm:$0xff] %vm3857, %v3838
  %3938 = vst.msk [vmem:[%s3 + $0x1af] sm:$0x1] %vm3859, %v3839
  %3939 = vst.msk [vmem:[%s3 + $0x1af] sm:$0xfe] %vm3855, %v3840
  %3940 = vst.msk [vmem:[%s3 + $0x1b7] sm:$0xff] %vm3857, %v3841
  %3941 = vst.msk [vmem:[%s3 + $0x1bf] sm:$0x1] %vm3859, %v3842
  %3942 = vst.msk [vmem:[%s3 + $0x1bf] sm:$0xfe] %vm3855, %v3843
  %3943 = vst.msk [vmem:[%s3 + $0x1c7] sm:$0xff] %vm3857, %v3844
  %3944 = vst.msk [vmem:[%s3 + $0x1cf] sm:$0x1] %vm3859, %v3845
  %3945 = vst.msk [vmem:[%s3 + $0x1cf] sm:$0xfe] %vm3855, %v3846
  %3946 = vst.msk [vmem:[%s3 + $0x1d7] sm:$0xff] %vm3857, %v3847
  %3947 = vst.msk [vmem:[%s3 + $0x1df] sm:$0x1] %vm3859, %v3848
  %3948 = vst.msk [vmem:[%s3 + $0x1df] sm:$0xfe] %vm3855, %v3849
  %3949 = vst.msk [vmem:[%s3 + $0x1e7] sm:$0xff] %vm3857, %v3850
  %3950 = vst.msk [vmem:[%s3 + $0x1ef] sm:$0x1] %vm3859, %v3851
  %3951 = vst.msk [vmem:[%s3 + $0x1ef] sm:$0xfe] %vm3855, %v3852
  %3952 = vst.msk [vmem:[%s3 + $0x1f7] sm:$0xff] %vm3857, %v3853
  %3953 = vst.msk [vmem:[%s3 + $0x1ff] sm:$0x1] %vm3859, %v3854
  // Predicated region
  $region14: #{tpu_custom_call.1} parent=0 // pred_check
    _
  $region15: #{tpu_custom_call.1} parent=0 // pred_check_branch
    %3955 = sbr.rel (0) target = $region17
  $region16: #{tpu_custom_call.1} parent=0 // pred_region
    _
  $region17: #{tpu_custom_call.1} parent=0 // pred_fallthru
    _
  // Predicated region
  $region18: #{tpu_custom_call.1} parent=0 // pred_check
    _
  $region19: #{tpu_custom_call.1} parent=0 // pred_check_branch
    %3957 = sbr.rel (0) target = $region21
  $region20: #{tpu_custom_call.1} parent=0 // pred_region
    _
  $region21: #{tpu_custom_call.1} parent=0 // pred_fallthru
    _

</llo_original>
